<compile_context>
chip_gen: v6e
topology: v6e:2x2x1
jax: 0.10.0
libtpu: 0.0.40
codegen_flags: <defaults>
</compile_context>

<pallas_src>
import jax
import jax.numpy as jnp
from jax.experimental import pallas as pl
from jax.experimental.pallas import tpu as pltpu


def _round_up(x: int, m: int) -> int:
    return (x + m - 1) // m * m


def _resident_spec(block_shape, index_map):
    """BlockSpec for grid-invariant operands: single-buffer (fetched once)."""
    if hasattr(pl, "Buffered"):
        try:
            return pl.BlockSpec(block_shape, index_map,
                                pipeline_mode=pl.Buffered(1))
        except TypeError:
            pass
    return pl.BlockSpec(block_shape, index_map)


def _base_model_kernel(x_ref, w1_ref, b1_ref, w2_ref, b2_ref, o_ref,
                       acc_ref, feat_ref):
    k = pl.program_id(1)

    @pl.when(k == 0)
    def _():
        # Fold the backbone bias into the accumulator init (saves a VPU add
        # in the epilogue).
        acc_ref[...] = jnp.broadcast_to(b1_ref[...], acc_ref.shape)

    # Backbone partial matmul: acc += x_tile @ W1_tile (bf16 MXU, f32 accum).
    # x arrives as f32 straight from HBM; the bf16 cast is VPU work hidden
    # under the MXU, saving a wrapper-side HBM pass over the activations.
    acc_ref[...] += jnp.dot(
        x_ref[...].astype(jnp.bfloat16), w1_ref[...],
        preferred_element_type=jnp.float32,
    )

    @pl.when(k == pl.num_programs(1) - 1)
    def _():
        # Epilogue: ReLU, stage features through a bf16 VMEM scratch (halves
        # live bytes, classifier MXU streams its LHS from VMEM), classifier
        # matmul + bias, single lane-dense store.
        feat_ref[...] = jnp.maximum(acc_ref[...], 0.0).astype(feat_ref.dtype)
        scores = jnp.dot(
            feat_ref[...], w2_ref[...], preferred_element_type=jnp.float32
        )
        o_ref[...] = (scores + b2_ref[...]).astype(o_ref.dtype)


def prepare_base_model_params(w1, b1, w2, b2):
    """One-time weight prep (bf16 cast + padding), hoisted out of forward()."""
    K, feat_dim = w1.shape
    num_classes = w2.shape[1]
    k_pad = _round_up(K, 128)
    nc_pad = _round_up(max(num_classes, 128), 128)   # lane-dense output
    w1_p = jnp.pad(w1.astype(jnp.bfloat16), ((0, k_pad - K), (0, 0)))
    w2_p = jnp.pad(w2.astype(jnp.bfloat16),
                   ((0, 0), (0, nc_pad - num_classes)))
    b1_2d = b1.reshape(1, feat_dim).astype(jnp.float32)
    b2_p = jnp.pad(
        b2.reshape(1, num_classes).astype(jnp.float32),
        ((0, 0), (0, nc_pad - num_classes)),
    )
    return dict(w1=w1_p, b1=b1_2d, w2=w2_p, b2=b2_p,
                K=K, feat_dim=feat_dim, num_classes=num_classes)


def _choose_tiles(B: int, k_pad: int, max_tk: int):
    # Batch tile: multiple of 8 (f32 sublane).  Small batches -> one tile;
    # medium batches -> 128 (fills v5e MXU, >=2 tiles feed both v7x cores);
    # large batches -> 256 (fills v6e/v7x 256-wide MXU, halves W1 traffic).
    if B <= 128:
        tm = _round_up(B, 8)
    elif B <= 512:
        tm = 128
    else:
        tm = 256
    # K tile: largest multiple of 128 that divides k_pad, capped at max_tk
    # (collapses to one K step whenever k_pad <= max_tk -> no pipeline
    # overhead for small K, no extra K padding for large K).
    tk = 128
    cand = min(_round_up(max_tk, 128), k_pad)
    while cand >= 128:
        if k_pad % cand == 0:
            tk = cand
            break
        cand -= 128
    return tm, tk


def base_model_forward(x_nchw, params, *, max_tk=2048):
    """x_nchw: (B, C, H, W) float32. Returns (B, num_classes) float32 logits."""
    B = x_nchw.shape[0]
    K = params["K"]
    feat_dim = params["feat_dim"]
    num_classes = params["num_classes"]
    w1_p, b1_2d, w2_p, b2_p = (params["w1"], params["b1"],
                               params["w2"], params["b2"])
    k_pad, nc_pad = w1_p.shape[0], w2_p.shape[1]

    tm, tk = _choose_tiles(B, k_pad, max_tk)
    b_pad = _round_up(B, tm)

    # x stays f32: flatten + (usually no-op) zero-pad only.
    x_flat = x_nchw.reshape(B, K)
    if b_pad != B or k_pad != K:
        x_p = jnp.pad(x_flat, ((0, b_pad - B), (0, k_pad - K)))
    else:
        x_p = x_flat

    grid = (b_pad // tm, k_pad // tk)

    flops = 2 * b_pad * k_pad * feat_dim + 2 * b_pad * feat_dim * nc_pad
    bytes_accessed = (
        x_p.size * 4 + w1_p.size * 2 + w2_p.size * 2
        + b1_2d.size * 4 + b2_p.size * 4 + b_pad * nc_pad * 4
    )

    out = pl.pallas_call(
        _base_model_kernel,
        out_shape=jax.ShapeDtypeStruct((b_pad, nc_pad), jnp.float32),
        grid_spec=pltpu.PrefetchScalarGridSpec(
            num_scalar_prefetch=0,
            grid=grid,
            in_specs=[
                pl.BlockSpec((tm, tk), lambda i, k: (i, k)),          # x (f32)
                pl.BlockSpec((tk, feat_dim), lambda i, k: (k, 0)),    # W1 tile
                _resident_spec((1, feat_dim), lambda i, k: (0, 0)),   # b1
                _resident_spec((feat_dim, nc_pad), lambda i, k: (0, 0)),  # W2
                _resident_spec((1, nc_pad), lambda i, k: (0, 0)),     # b2
            ],
            out_specs=pl.BlockSpec((tm, nc_pad), lambda i, k: (i, 0)),
            scratch_shapes=[
                pltpu.VMEM((tm, feat_dim), jnp.float32),    # f32 accumulator
                pltpu.VMEM((tm, feat_dim), jnp.bfloat16),   # bf16 feat staging
            ],
        ),
        compiler_params=pltpu.CompilerParams(
            dimension_semantics=("parallel", "arbitrary"),
        ),
        cost_estimate=pl.CostEstimate(
            flops=flops, transcendentals=0, bytes_accessed=bytes_accessed
        ),
    )(x_p, w1_p, b1_2d, w2_p, b2_p)

    return out[:B, :num_classes]


def _reference_forward(x_nchw, w1, b1, w2, b2):
    # Matches kernel numerics: bf16 operands (incl. bf16 features), f32 accum.
    B = x_nchw.shape[0]
    x_flat = x_nchw.reshape(B, -1)
    feat = jnp.dot(
        x_flat.astype(jnp.bfloat16), w1.astype(jnp.bfloat16),
        preferred_element_type=jnp.float32,
    ) + b1
    feat = jnp.maximum(feat, 0.0)
    scores = jnp.dot(
        feat.astype(jnp.bfloat16), w2.astype(jnp.bfloat16),
        preferred_element_type=jnp.float32,
    ) + b2
    return scores


if __name__ == "__main__":
    # Small shapes: batch=2, channels=4, spatial=16x16, num_classes=10.
    B, C, H, W = 2, 4, 16, 16
    FEAT = 512            # BaseModel.final_feat_dim
    NUM_CLASSES = 10      # params.num_classes
    K = C * H * W

    key = jax.random.PRNGKey(0)
    kx, kw1, kb1, kw2 = jax.random.split(key, 4)

    x = jax.random.normal(kx, (B, C, H, W), dtype=jnp.float32)

    # Deterministic synthetic parameters (backbone is abstract; no checkpoint).
    w1 = jax.random.normal(kw1, (K, FEAT), dtype=jnp.float32) * 0.02
    b1 = jax.random.normal(kb1, (FEAT,), dtype=jnp.float32) * 0.01
    w2 = jax.random.normal(kw2, (FEAT, NUM_CLASSES), dtype=jnp.float32) * 0.02
    b2 = jnp.zeros((NUM_CLASSES,), dtype=jnp.float32)  # classifier.bias = 0

    params = prepare_base_model_params(w1, b1, w2, b2)   # one-time prep
    out = jax.block_until_ready(base_model_forward(x, params))

    ref = _reference_forward(x, w1, b1, w2, b2)
    assert out.shape == (B, NUM_CLASSES)
    assert jnp.allclose(out, ref, atol=1e-2, rtol=1e-2), "mismatch vs reference"

    # TODO(synk): compute_cls_loss_and_accuracy (CrossEntropyLoss + accuracy)
    # and the on_step/on_epoch hooks are training utilities, not forward().
    print("KERNEL_OK")
</pallas_src>

<mosaic_0001>
module attributes {stable_mosaic.version = 11 : i64} {
  func.func @_base_model_kernel(%arg0: i32, %arg1: i32, %arg2: memref<8x1024xf32, #tpu.memory_space<vmem>>, %arg3: memref<1024x512xbf16, #tpu.memory_space<vmem>>, %arg4: memref<1x512xf32, #tpu.memory_space<vmem>>, %arg5: memref<512x128xbf16, #tpu.memory_space<vmem>>, %arg6: memref<1x128xf32, #tpu.memory_space<vmem>>, %arg7: memref<8x128xf32, #tpu.memory_space<vmem>>, %arg8: memref<8x512xf32, #tpu.memory_space<vmem>>, %arg9: memref<8x512xbf16, #tpu.memory_space<vmem>>) attributes {dimension_semantics = [#tpu.dimension_semantics<parallel>, #tpu.dimension_semantics<arbitrary>], iteration_bounds = array<i64: 1, 1>, scalar_prefetch = 0 : i64, scratch_operands = 2 : i64, tpu.core_type = #tpu.core_type<tc>, window_params = [{transform_indices = @transform_0, window_bounds = array<i64: 8, 1024>}, {transform_indices = @transform_1, window_bounds = array<i64: 1024, 512>}, {pipeline_mode = #tpu.pipeline_mode<synchronous>, transform_indices = @transform_2, window_bounds = array<i64: 1, 512>}, {pipeline_mode = #tpu.pipeline_mode<synchronous>, transform_indices = @transform_3, window_bounds = array<i64: 512, 128>}, {pipeline_mode = #tpu.pipeline_mode<synchronous>, transform_indices = @transform_4, window_bounds = array<i64: 1, 128>}, {transform_indices = @transform_5, window_bounds = array<i64: 8, 128>}]} {
    %c0_i32 = arith.constant 0 : i32
    %0 = arith.cmpi eq, %arg1, %c0_i32 : i32
    %1 = arith.extui %0 : i1 to i32
    %c0_i32_0 = arith.constant 0 : i32
    %2 = arith.cmpi ne, %1, %c0_i32_0 : i32
    scf.if %2 {
      %c0_10 = arith.constant 0 : index
      %c0_11 = arith.constant 0 : index
      %13 = vector.load %arg4[%c0_10, %c0_11] : memref<1x512xf32, #tpu.memory_space<vmem>>, vector<1x512xf32>
      %14 = vector.shape_cast %13 : vector<1x512xf32> to vector<1x512xf32>
      %15 = vector.broadcast %14 : vector<1x512xf32> to vector<8x512xf32>
      %c0_12 = arith.constant 0 : index
      %c0_13 = arith.constant 0 : index
      %16 = vector.load %arg8[%c0_12, %c0_13] : memref<8x512xf32, #tpu.memory_space<vmem>>, vector<8x512xf32>
      tpu.vector_store %arg8[%c0_12, %c0_13], %15 {strides = array<i32>} : memref<8x512xf32, #tpu.memory_space<vmem>>, vector<8x512xf32>,
    } else {
    }
    %c0 = arith.constant 0 : index
    %c0_1 = arith.constant 0 : index
    %3 = vector.load %arg8[%c0, %c0_1] : memref<8x512xf32, #tpu.memory_space<vmem>>, vector<8x512xf32>
    %c0_2 = arith.constant 0 : index
    %c0_3 = arith.constant 0 : index
    %4 = vector.load %arg2[%c0_2, %c0_3] : memref<8x1024xf32, #tpu.memory_space<vmem>>, vector<8x1024xf32>
    %5 = arith.truncf %4 : vector<8x1024xf32> to vector<8x1024xbf16>
    %c0_4 = arith.constant 0 : index
    %c0_5 = arith.constant 0 : index
    %6 = vector.load %arg3[%c0_4, %c0_5] : memref<1024x512xbf16, #tpu.memory_space<vmem>>, vector<1024x512xbf16>
    %cst = arith.constant dense<0.000000e+00> : vector<8x512xf32>
    %7 = tpu.matmul %5, %6, %cst {dimension_numbers = #tpu.dot_dimension_numbers<[1], [0], [0], [1], [0, 0, 1, 1], [], []>} : vector<8x1024xbf16>, vector<1024x512xbf16>, vector<8x512xf32> -> vector<8x512xf32>
    %8 = arith.addf %3, %7 : vector<8x512xf32>
    %c0_6 = arith.constant 0 : index
    %c0_7 = arith.constant 0 : index
    %9 = vector.load %arg8[%c0_6, %c0_7] : memref<8x512xf32, #tpu.memory_space<vmem>>, vector<8x512xf32>
    tpu.vector_store %arg8[%c0_6, %c0_7], %8 {strides = array<i32>} : memref<8x512xf32, #tpu.memory_space<vmem>>, vector<8x512xf32>,
    %c0_i32_8 = arith.constant 0 : i32
    %10 = arith.cmpi eq, %arg1, %c0_i32_8 : i32
    %11 = arith.extui %10 : i1 to i32
    %c0_i32_9 = arith.constant 0 : i32
    %12 = arith.cmpi ne, %11, %c0_i32_9 : i32
    scf.if %12 {
      %c0_10 = arith.constant 0 : index
      %c0_11 = arith.constant 0 : index
      %13 = vector.load %arg8[%c0_10, %c0_11] : memref<8x512xf32, #tpu.memory_space<vmem>>, vector<8x512xf32>
      %cst_12 = arith.constant 0.000000e+00 : f32
      %14 = vector.broadcast %cst_12 : f32 to vector<8x512xf32>
      %15 = arith.maximumf %13, %14 : vector<8x512xf32>
      %16 = arith.truncf %15 : vector<8x512xf32> to vector<8x512xbf16>
      %c0_13 = arith.constant 0 : index
      %c0_14 = arith.constant 0 : index
      %17 = vector.load %arg9[%c0_13, %c0_14] : memref<8x512xbf16, #tpu.memory_space<vmem>>, vector<8x512xbf16>
      tpu.vector_store %arg9[%c0_13, %c0_14], %16 {strides = array<i32>} : memref<8x512xbf16, #tpu.memory_space<vmem>>, vector<8x512xbf16>,
      %c0_15 = arith.constant 0 : index
      %c0_16 = arith.constant 0 : index
      %18 = vector.load %arg9[%c0_15, %c0_16] : memref<8x512xbf16, #tpu.memory_space<vmem>>, vector<8x512xbf16>
      %c0_17 = arith.constant 0 : index
      %c0_18 = arith.constant 0 : index
      %19 = vector.load %arg5[%c0_17, %c0_18] : memref<512x128xbf16, #tpu.memory_space<vmem>>, vector<512x128xbf16>
      %cst_19 = arith.constant dense<0.000000e+00> : vector<8x128xf32>
      %20 = tpu.matmul %18, %19, %cst_19 {dimension_numbers = #tpu.dot_dimension_numbers<[1], [0], [0], [1], [0, 0, 1, 1], [], []>} : vector<8x512xbf16>, vector<512x128xbf16>, vector<8x128xf32> -> vector<8x128xf32>
      %c0_20 = arith.constant 0 : index
      %c0_21 = arith.constant 0 : index
      %21 = vector.load %arg6[%c0_20, %c0_21] : memref<1x128xf32, #tpu.memory_space<vmem>>, vector<1x128xf32>
      %22 = vector.broadcast %21 : vector<1x128xf32> to vector<8x128xf32>
      %23 = arith.addf %20, %22 : vector<8x128xf32>
      %c0_22 = arith.constant 0 : index
      %c0_23 = arith.constant 0 : index
      %24 = vector.load %arg7[%c0_22, %c0_23] : memref<8x128xf32, #tpu.memory_space<vmem>>, vector<8x128xf32>
      tpu.vector_store %arg7[%c0_22, %c0_23], %23 {strides = array<i32>} : memref<8x128xf32, #tpu.memory_space<vmem>>, vector<8x128xf32>,
    } else {
    }
    return
  }
  func.func @transform_0(%arg0: i32, %arg1: i32) -> (i32, i32) {
    %c0_i32 = arith.constant 0 : i32
    return %arg0, %arg1 : i32, i32
  }
  func.func @transform_1(%arg0: i32, %arg1: i32) -> (i32, i32) {
    %c0_i32 = arith.constant 0 : i32
    %c0_i32_0 = arith.constant 0 : i32
    return %arg1, %c0_i32 : i32, i32
  }
  func.func @transform_2(%arg0: i32, %arg1: i32) -> (i32, i32) {
    %c0_i32 = arith.constant 0 : i32
    %c0_i32_0 = arith.constant 0 : i32
    %c0_i32_1 = arith.constant 0 : i32
    return %c0_i32, %c0_i32_0 : i32, i32
  }
  func.func @transform_3(%arg0: i32, %arg1: i32) -> (i32, i32) {
    %c0_i32 = arith.constant 0 : i32
    %c0_i32_0 = arith.constant 0 : i32
    %c0_i32_1 = arith.constant 0 : i32
    return %c0_i32, %c0_i32_0 : i32, i32
  }
  func.func @transform_4(%arg0: i32, %arg1: i32) -> (i32, i32) {
    %c0_i32 = arith.constant 0 : i32
    %c0_i32_0 = arith.constant 0 : i32
    %c0_i32_1 = arith.constant 0 : i32
    return %c0_i32, %c0_i32_0 : i32, i32
  }
  func.func @transform_5(%arg0: i32, %arg1: i32) -> (i32, i32) {
    %c0_i32 = arith.constant 0 : i32
    %c0_i32_0 = arith.constant 0 : i32
    return %arg0, %c0_i32 : i32, i32
  }
}

</mosaic_0001>

<llo_original>
// kernel: tpu_custom_call.1
$region0: #{tpu_custom_call.1}
  #allocation0 [shape = 'u32[]', space=smem, size = 0x4, offset = 0x4, fixed_abs, tag = 'smem constant byte address 0x4 - core index']
  #allocation1 [shape = 'u32[144,128]{1,0:T(1,128)}', space=vmem, size = 0x12000, scoped, tag = 'internal scratch']
  #allocation2 [shape = 'f32[8,512]{1,0:T(8,128)}', space=vmem, size = 0x4000, scoped, tag = 'scratch operand']
  #allocation3 [shape = 'bf16[8,512]{1,0:T(8,128)(2,1)}', space=vmem, size = 0x2000, scoped, tag = 'scratch operand']
  %s0 = inlined_call_operand.hbm [shape: f32[8,1024], index: 0, kind: input, shape index: {}]
  %s1 = inlined_call_operand.hbm [shape: bf16[1024,512], index: 1, kind: input, shape index: {}]
  %s2 = inlined_call_operand.hbm [shape: f32[1,512], index: 2, kind: input, shape index: {}]
  %s3 = inlined_call_operand.hbm [shape: bf16[512,128], index: 3, kind: input, shape index: {}]
  %s4 = inlined_call_operand.vmem [shape: f32[1,128], index: 4, kind: input, shape index: {}]
  %s5 = inlined_call_operand.hbm [shape: f32[8,128], index: 5, kind: output, shape index: {}]
  %s6 = sld [smem:[#allocation0]]
  $region54: #{tpu_custom_call.1} parent=0
    _
  %s8 = ssub.s32 1, %s6
  %s9 = scalar_select 0, %s8, %s6
  $region1: #{tpu_custom_call.1} parent=0
    #allocation4 [shape = 'u8[32768]{0}', space=vmem, size = 0x8000, scoped, tag = 'input window, operand 0, single buffered']
    #allocation5 [shape = 's32[1]{0}', space=sflag, size = 0x4, scoped, tag = 'scoped memory for tpu_custom_call.1']
    #allocation6 [shape = 's32[1]{0}', space=sflag, size = 0x4, scoped, tag = 'scoped memory for tpu_custom_call.1']
    #allocation7 [shape = 'u8[1048576]{0}', space=vmem, size = 0x100000, scoped, tag = 'input window, operand 1, single buffered']
    #allocation8 [shape = 's32[1]{0}', space=sflag, size = 0x4, scoped, tag = 'scoped memory for tpu_custom_call.1']
    #allocation9 [shape = 'u8[2048]{0}', space=vmem, size = 0x800, scoped, tag = 'input window, operand 2, single buffered']
    #allocation10 [shape = 'u8[131072]{0}', space=vmem, size = 0x20000, scoped, tag = 'input window, operand 3, single buffered']
    #allocation11 [shape = 's32[1]{0}', space=sflag, size = 0x4, scoped, tag = 'scoped memory for tpu_custom_call.1']
    #allocation12 [shape = 'u8[4096]{0}', space=vmem, size = 0x1000, scoped, tag = 'output window, operand 0, single buffered']
    %10 = vsyncpa [#allocation5], 0
    %11 = vsyncpa [#allocation8], 0
    %12 = vsyncpa [#allocation11], 0
    %13 = vsyncpa [#allocation6], 0
    // Predicated region
    $region2: #{tpu_custom_call.1} parent=1 // pred_check
      _
    $region3: #{tpu_custom_call.1} parent=1 // pred_check_branch
      %15 = sbr.rel (0) target = $region5
    $region4: #{tpu_custom_call.1} parent=1 // pred_region
      %s17 = ssub.s32 1024, 1024
      %18 = vsyncadd [#allocation5], %s17
      %s20 = sshll.u32 [#allocation4], 4
      %s21 = int_to_ptr.vmem [resolvable:$true] %s20
      %23 = dma.hbm_to_vmem [thread:$0]  %s0, 1024, %s21, [#allocation5]
    $region5: #{tpu_custom_call.1} parent=1 // pred_fallthru
      _
    // Predicated region
    $region6: #{tpu_custom_call.1} parent=1 // pred_check
      _
    $region7: #{tpu_custom_call.1} parent=1 // pred_check_branch
      %25 = sbr.rel (0) target = $region9
    $region8: #{tpu_custom_call.1} parent=1 // pred_region
      %s27 = ssub.s32 32768, 32768
      %28 = vsyncadd [#allocation8], %s27
      %s29 = sshll.u32 [#allocation7], 4
      %s30 = int_to_ptr.vmem [resolvable:$true] %s29
      %35 = dma.hbm_to_vmem [thread:$0]  %s1, 32768, %s30, [#allocation8], 256, 256, 16
    $region9: #{tpu_custom_call.1} parent=1 // pred_fallthru
      _
    // Predicated region
    $region10: #{tpu_custom_call.1} parent=1 // pred_check
      _
    $region11: #{tpu_custom_call.1} parent=1 // pred_check_branch
      %37 = sbr.rel (0) target = $region13
    $region12: #{tpu_custom_call.1} parent=1 // pred_region
      %s39 = ssub.s32 64, 64
      %40 = vsyncadd [#allocation8], %s39
      %s42 = sshll.u32 [#allocation9], 4
      %s43 = int_to_ptr.vmem [resolvable:$true] %s42
      %45 = dma.hbm_to_vmem [thread:$0]  %s2, 64, %s43, [#allocation8]
    $region13: #{tpu_custom_call.1} parent=1 // pred_fallthru
      _
    // Predicated region
    $region14: #{tpu_custom_call.1} parent=1 // pred_check
      _
    $region15: #{tpu_custom_call.1} parent=1 // pred_check_branch
      %47 = sbr.rel (0) target = $region17
    $region16: #{tpu_custom_call.1} parent=1 // pred_region
      %s49 = ssub.s32 4096, 4096
      %50 = vsyncadd [#allocation11], %s49
      %s51 = sshll.u32 [#allocation10], 4
      %s52 = int_to_ptr.vmem [resolvable:$true] %s51
      %57 = dma.hbm_to_vmem [thread:$0]  %s3, 4096, %s52, [#allocation11], 64, 64, 4
    $region17: #{tpu_custom_call.1} parent=1 // pred_fallthru
      _
    // Predicated region
    $region18: #{tpu_custom_call.1} parent=1 // pred_check
      _
    $region19: #{tpu_custom_call.1} parent=1 // pred_check_branch
      %59 = sbr.rel (0) target = $region21
    $region20: #{tpu_custom_call.1} parent=1 // pred_region
      _
    $region21: #{tpu_custom_call.1} parent=1 // pred_fallthru
      _
    // Predicated region
    $region22: #{tpu_custom_call.1} parent=1 // pred_check
      _
    $region23: #{tpu_custom_call.1} parent=1 // pred_check_branch
      %61 = sbr.rel (0) target = $region25
    $region24: #{tpu_custom_call.1} parent=1 // pred_region
      %62 = dma.done [#allocation5], 1024
    $region25: #{tpu_custom_call.1} parent=1 // pred_fallthru
      _
    // Predicated region
    $region26: #{tpu_custom_call.1} parent=1 // pred_check
      _
    $region27: #{tpu_custom_call.1} parent=1 // pred_check_branch
      %64 = sbr.rel (0) target = $region29
    $region28: #{tpu_custom_call.1} parent=1 // pred_region
      %65 = dma.done [#allocation8], 32768
    $region29: #{tpu_custom_call.1} parent=1 // pred_fallthru
      _
    // Predicated region
    $region30: #{tpu_custom_call.1} parent=1 // pred_check
      _
    $region31: #{tpu_custom_call.1} parent=1 // pred_check_branch
      %67 = sbr.rel (0) target = $region33
    $region32: #{tpu_custom_call.1} parent=1 // pred_region
      %68 = dma.done [#allocation8], 64
    $region33: #{tpu_custom_call.1} parent=1 // pred_fallthru
      _
    // Predicated region
    $region34: #{tpu_custom_call.1} parent=1 // pred_check
      _
    $region35: #{tpu_custom_call.1} parent=1 // pred_check_branch
      %70 = sbr.rel (0) target = $region37
    $region36: #{tpu_custom_call.1} parent=1 // pred_region
      %71 = dma.done [#allocation11], 4096
    $region37: #{tpu_custom_call.1} parent=1 // pred_fallthru
      _
    %p73 = scmp.eq.s32.totalorder 0, 0
    // Predicated region
    $region38: #{tpu_custom_call.1} parent=1 // pred_check
      %p74 = pneg %p73
    $region39: #{tpu_custom_call.1} parent=1 // pred_check_branch
      %76 = sbr.rel (%p74) target = $region41
    $region40: #{tpu_custom_call.1} parent=1 // pred_region
      %v77 = vld [vmem:[#allocation9] sm:$0xf]
      %v79 = vlaneseq
      %v80 = vshrl.u32 %v79, 7
      %v81 = vsub.s32 0, %v80
      %v82 = vrot.slane %v77, %v81
      %v83 = vlaneseq
      %v84 = vshrl.u32 %v83, 7
      %v85 = vsub.s32 1, %v84
      %v86 = vrot.slane %v77, %v85
      %v87 = vlaneseq
      %v88 = vshrl.u32 %v87, 7
      %v89 = vsub.s32 2, %v88
      %v90 = vrot.slane %v77, %v89
      %v91 = vlaneseq
      %v92 = vshrl.u32 %v91, 7
      %v93 = vsub.s32 3, %v92
      %v94 = vrot.slane %v77, %v93
      %99 = vst [vmem:[#allocation2] sm:$0xff] %v82
      %100 = vst [vmem:[#allocation2 + $0x8] sm:$0xff] %v86
      %101 = vst [vmem:[#allocation2 + $0x10] sm:$0xff] %v90
      %102 = vst [vmem:[#allocation2 + $0x18] sm:$0xff] %v94
    $region41: #{tpu_custom_call.1} parent=1 // pred_fallthru
      _
    %v103 = vld [vmem:[#allocation2] sm:$0xff]
    %v104 = vld [vmem:[#allocation2 + $0x8] sm:$0xff]
    %v105 = vld [vmem:[#allocation2 + $0x10] sm:$0xff]
    %v106 = vld [vmem:[#allocation2 + $0x18] sm:$0xff]
    %v107 = vld [vmem:[#allocation4] sm:$0xff]
    %v108 = vld [vmem:[#allocation4 + $0x8] sm:$0xff]
    %v109 = vld [vmem:[#allocation4 + $0x10] sm:$0xff]
    %v110 = vld [vmem:[#allocation4 + $0x18] sm:$0xff]
    %v111 = vld [vmem:[#allocation4 + $0x20] sm:$0xff]
    %v112 = vld [vmem:[#allocation4 + $0x28] sm:$0xff]
    %v113 = vld [vmem:[#allocation4 + $0x30] sm:$0xff]
    %v114 = vld [vmem:[#allocation4 + $0x38] sm:$0xff]
    %v115 = vpack.c.bf16 %v107, %v107
    %v116 = vpack.c.bf16 %v108, %v108
    %v117 = vpack.c.bf16 %v109, %v109
    %v118 = vpack.c.bf16 %v110, %v110
    %v119 = vpack.c.bf16 %v111, %v111
    %v120 = vpack.c.bf16 %v112, %v112
    %v121 = vpack.c.bf16 %v113, %v113
    %v122 = vpack.c.bf16 %v114, %v114
    %v123 = vld [vmem:[#allocation7] sm:$0xff]
    %v124 = vld [vmem:[#allocation7 + $0x8] sm:$0xff]
    %v125 = vld [vmem:[#allocation7 + $0x10] sm:$0xff]
    %v126 = vld [vmem:[#allocation7 + $0x18] sm:$0xff]
    %v127 = vld [vmem:[#allocation7 + $0x20] sm:$0xff]
    %v128 = vld [vmem:[#allocation7 + $0x28] sm:$0xff]
    %v129 = vld [vmem:[#allocation7 + $0x30] sm:$0xff]
    %v130 = vld [vmem:[#allocation7 + $0x38] sm:$0xff]
    %v131 = vld [vmem:[#allocation7 + $0x40] sm:$0xff]
    %v132 = vld [vmem:[#allocation7 + $0x48] sm:$0xff]
    %v133 = vld [vmem:[#allocation7 + $0x50] sm:$0xff]
    %v134 = vld [vmem:[#allocation7 + $0x58] sm:$0xff]
    %v135 = vld [vmem:[#allocation7 + $0x60] sm:$0xff]
    %v136 = vld [vmem:[#allocation7 + $0x68] sm:$0xff]
    %v137 = vld [vmem:[#allocation7 + $0x70] sm:$0xff]
    %v138 = vld [vmem:[#allocation7 + $0x78] sm:$0xff]
    %v139 = vld [vmem:[#allocation7 + $0x80] sm:$0xff]
    %v140 = vld [vmem:[#allocation7 + $0x88] sm:$0xff]
    %v141 = vld [vmem:[#allocation7 + $0x90] sm:$0xff]
    %v142 = vld [vmem:[#allocation7 + $0x98] sm:$0xff]
    %v143 = vld [vmem:[#allocation7 + $0xa0] sm:$0xff]
    %v144 = vld [vmem:[#allocation7 + $0xa8] sm:$0xff]
    %v145 = vld [vmem:[#allocation7 + $0xb0] sm:$0xff]
    %v146 = vld [vmem:[#allocation7 + $0xb8] sm:$0xff]
    %v147 = vld [vmem:[#allocation7 + $0xc0] sm:$0xff]
    %v148 = vld [vmem:[#allocation7 + $0xc8] sm:$0xff]
    %v149 = vld [vmem:[#allocation7 + $0xd0] sm:$0xff]
    %v150 = vld [vmem:[#allocation7 + $0xd8] sm:$0xff]
    %v151 = vld [vmem:[#allocation7 + $0xe0] sm:$0xff]
    %v152 = vld [vmem:[#allocation7 + $0xe8] sm:$0xff]
    %v153 = vld [vmem:[#allocation7 + $0xf0] sm:$0xff]
    %v154 = vld [vmem:[#allocation7 + $0xf8] sm:$0xff]
    %v155 = vld [vmem:[#allocation7 + $0x100] sm:$0xff]
    %v156 = vld [vmem:[#allocation7 + $0x108] sm:$0xff]
    %v157 = vld [vmem:[#allocation7 + $0x110] sm:$0xff]
    %v158 = vld [vmem:[#allocation7 + $0x118] sm:$0xff]
    %v159 = vld [vmem:[#allocation7 + $0x120] sm:$0xff]
    %v160 = vld [vmem:[#allocation7 + $0x128] sm:$0xff]
    %v161 = vld [vmem:[#allocation7 + $0x130] sm:$0xff]
    %v162 = vld [vmem:[#allocation7 + $0x138] sm:$0xff]
    %v163 = vld [vmem:[#allocation7 + $0x140] sm:$0xff]
    %v164 = vld [vmem:[#allocation7 + $0x148] sm:$0xff]
    %v165 = vld [vmem:[#allocation7 + $0x150] sm:$0xff]
    %v166 = vld [vmem:[#allocation7 + $0x158] sm:$0xff]
    %v167 = vld [vmem:[#allocation7 + $0x160] sm:$0xff]
    %v168 = vld [vmem:[#allocation7 + $0x168] sm:$0xff]
    %v169 = vld [vmem:[#allocation7 + $0x170] sm:$0xff]
    %v170 = vld [vmem:[#allocation7 + $0x178] sm:$0xff]
    %v171 = vld [vmem:[#allocation7 + $0x180] sm:$0xff]
    %v172 = vld [vmem:[#allocation7 + $0x188] sm:$0xff]
    %v173 = vld [vmem:[#allocation7 + $0x190] sm:$0xff]
    %v174 = vld [vmem:[#allocation7 + $0x198] sm:$0xff]
    %v175 = vld [vmem:[#allocation7 + $0x1a0] sm:$0xff]
    %v176 = vld [vmem:[#allocation7 + $0x1a8] sm:$0xff]
    %v177 = vld [vmem:[#allocation7 + $0x1b0] sm:$0xff]
    %v178 = vld [vmem:[#allocation7 + $0x1b8] sm:$0xff]
    %v179 = vld [vmem:[#allocation7 + $0x1c0] sm:$0xff]
    %v180 = vld [vmem:[#allocation7 + $0x1c8] sm:$0xff]
    %v181 = vld [vmem:[#allocation7 + $0x1d0] sm:$0xff]
    %v182 = vld [vmem:[#allocation7 + $0x1d8] sm:$0xff]
    %v183 = vld [vmem:[#allocation7 + $0x1e0] sm:$0xff]
    %v184 = vld [vmem:[#allocation7 + $0x1e8] sm:$0xff]
    %v185 = vld [vmem:[#allocation7 + $0x1f0] sm:$0xff]
    %v186 = vld [vmem:[#allocation7 + $0x1f8] sm:$0xff]
    %v187 = vld [vmem:[#allocation7 + $0x200] sm:$0xff]
    %v188 = vld [vmem:[#allocation7 + $0x208] sm:$0xff]
    %v189 = vld [vmem:[#allocation7 + $0x210] sm:$0xff]
    %v190 = vld [vmem:[#allocation7 + $0x218] sm:$0xff]
    %v191 = vld [vmem:[#allocation7 + $0x220] sm:$0xff]
    %v192 = vld [vmem:[#allocation7 + $0x228] sm:$0xff]
    %v193 = vld [vmem:[#allocation7 + $0x230] sm:$0xff]
    %v194 = vld [vmem:[#allocation7 + $0x238] sm:$0xff]
    %v195 = vld [vmem:[#allocation7 + $0x240] sm:$0xff]
    %v196 = vld [vmem:[#allocation7 + $0x248] sm:$0xff]
    %v197 = vld [vmem:[#allocation7 + $0x250] sm:$0xff]
    %v198 = vld [vmem:[#allocation7 + $0x258] sm:$0xff]
    %v199 = vld [vmem:[#allocation7 + $0x260] sm:$0xff]
    %v200 = vld [vmem:[#allocation7 + $0x268] sm:$0xff]
    %v201 = vld [vmem:[#allocation7 + $0x270] sm:$0xff]
    %v202 = vld [vmem:[#allocation7 + $0x278] sm:$0xff]
    %v203 = vld [vmem:[#allocation7 + $0x280] sm:$0xff]
    %v204 = vld [vmem:[#allocation7 + $0x288] sm:$0xff]
    %v205 = vld [vmem:[#allocation7 + $0x290] sm:$0xff]
    %v206 = vld [vmem:[#allocation7 + $0x298] sm:$0xff]
    %v207 = vld [vmem:[#allocation7 + $0x2a0] sm:$0xff]
    %v208 = vld [vmem:[#allocation7 + $0x2a8] sm:$0xff]
    %v209 = vld [vmem:[#allocation7 + $0x2b0] sm:$0xff]
    %v210 = vld [vmem:[#allocation7 + $0x2b8] sm:$0xff]
    %v211 = vld [vmem:[#allocation7 + $0x2c0] sm:$0xff]
    %v212 = vld [vmem:[#allocation7 + $0x2c8] sm:$0xff]
    %v213 = vld [vmem:[#allocation7 + $0x2d0] sm:$0xff]
    %v214 = vld [vmem:[#allocation7 + $0x2d8] sm:$0xff]
    %v215 = vld [vmem:[#allocation7 + $0x2e0] sm:$0xff]
    %v216 = vld [vmem:[#allocation7 + $0x2e8] sm:$0xff]
    %v217 = vld [vmem:[#allocation7 + $0x2f0] sm:$0xff]
    %v218 = vld [vmem:[#allocation7 + $0x2f8] sm:$0xff]
    %v219 = vld [vmem:[#allocation7 + $0x300] sm:$0xff]
    %v220 = vld [vmem:[#allocation7 + $0x308] sm:$0xff]
    %v221 = vld [vmem:[#allocation7 + $0x310] sm:$0xff]
    %v222 = vld [vmem:[#allocation7 + $0x318] sm:$0xff]
    %v223 = vld [vmem:[#allocation7 + $0x320] sm:$0xff]
    %v224 = vld [vmem:[#allocation7 + $0x328] sm:$0xff]
    %v225 = vld [vmem:[#allocation7 + $0x330] sm:$0xff]
    %v226 = vld [vmem:[#allocation7 + $0x338] sm:$0xff]
    %v227 = vld [vmem:[#allocation7 + $0x340] sm:$0xff]
    %v228 = vld [vmem:[#allocation7 + $0x348] sm:$0xff]
    %v229 = vld [vmem:[#allocation7 + $0x350] sm:$0xff]
    %v230 = vld [vmem:[#allocation7 + $0x358] sm:$0xff]
    %v231 = vld [vmem:[#allocation7 + $0x360] sm:$0xff]
    %v232 = vld [vmem:[#allocation7 + $0x368] sm:$0xff]
    %v233 = vld [vmem:[#allocation7 + $0x370] sm:$0xff]
    %v234 = vld [vmem:[#allocation7 + $0x378] sm:$0xff]
    %v235 = vld [vmem:[#allocation7 + $0x380] sm:$0xff]
    %v236 = vld [vmem:[#allocation7 + $0x388] sm:$0xff]
    %v237 = vld [vmem:[#allocation7 + $0x390] sm:$0xff]
    %v238 = vld [vmem:[#allocation7 + $0x398] sm:$0xff]
    %v239 = vld [vmem:[#allocation7 + $0x3a0] sm:$0xff]
    %v240 = vld [vmem:[#allocation7 + $0x3a8] sm:$0xff]
    %v241 = vld [vmem:[#allocation7 + $0x3b0] sm:$0xff]
    %v242 = vld [vmem:[#allocation7 + $0x3b8] sm:$0xff]
    %v243 = vld [vmem:[#allocation7 + $0x3c0] sm:$0xff]
    %v244 = vld [vmem:[#allocation7 + $0x3c8] sm:$0xff]
    %v245 = vld [vmem:[#allocation7 + $0x3d0] sm:$0xff]
    %v246 = vld [vmem:[#allocation7 + $0x3d8] sm:$0xff]
    %v247 = vld [vmem:[#allocation7 + $0x3e0] sm:$0xff]
    %v248 = vld [vmem:[#allocation7 + $0x3e8] sm:$0xff]
    %v249 = vld [vmem:[#allocation7 + $0x3f0] sm:$0xff]
    %v250 = vld [vmem:[#allocation7 + $0x3f8] sm:$0xff]
    %v251 = vld [vmem:[#allocation7 + $0x400] sm:$0xff]
    %v252 = vld [vmem:[#allocation7 + $0x408] sm:$0xff]
    %v253 = vld [vmem:[#allocation7 + $0x410] sm:$0xff]
    %v254 = vld [vmem:[#allocation7 + $0x418] sm:$0xff]
    %v255 = vld [vmem:[#allocation7 + $0x420] sm:$0xff]
    %v256 = vld [vmem:[#allocation7 + $0x428] sm:$0xff]
    %v257 = vld [vmem:[#allocation7 + $0x430] sm:$0xff]
    %v258 = vld [vmem:[#allocation7 + $0x438] sm:$0xff]
    %v259 = vld [vmem:[#allocation7 + $0x440] sm:$0xff]
    %v260 = vld [vmem:[#allocation7 + $0x448] sm:$0xff]
    %v261 = vld [vmem:[#allocation7 + $0x450] sm:$0xff]
    %v262 = vld [vmem:[#allocation7 + $0x458] sm:$0xff]
    %v263 = vld [vmem:[#allocation7 + $0x460] sm:$0xff]
    %v264 = vld [vmem:[#allocation7 + $0x468] sm:$0xff]
    %v265 = vld [vmem:[#allocation7 + $0x470] sm:$0xff]
    %v266 = vld [vmem:[#allocation7 + $0x478] sm:$0xff]
    %v267 = vld [vmem:[#allocation7 + $0x480] sm:$0xff]
    %v268 = vld [vmem:[#allocation7 + $0x488] sm:$0xff]
    %v269 = vld [vmem:[#allocation7 + $0x490] sm:$0xff]
    %v270 = vld [vmem:[#allocation7 + $0x498] sm:$0xff]
    %v271 = vld [vmem:[#allocation7 + $0x4a0] sm:$0xff]
    %v272 = vld [vmem:[#allocation7 + $0x4a8] sm:$0xff]
    %v273 = vld [vmem:[#allocation7 + $0x4b0] sm:$0xff]
    %v274 = vld [vmem:[#allocation7 + $0x4b8] sm:$0xff]
    %v275 = vld [vmem:[#allocation7 + $0x4c0] sm:$0xff]
    %v276 = vld [vmem:[#allocation7 + $0x4c8] sm:$0xff]
    %v277 = vld [vmem:[#allocation7 + $0x4d0] sm:$0xff]
    %v278 = vld [vmem:[#allocation7 + $0x4d8] sm:$0xff]
    %v279 = vld [vmem:[#allocation7 + $0x4e0] sm:$0xff]
    %v280 = vld [vmem:[#allocation7 + $0x4e8] sm:$0xff]
    %v281 = vld [vmem:[#allocation7 + $0x4f0] sm:$0xff]
    %v282 = vld [vmem:[#allocation7 + $0x4f8] sm:$0xff]
    %v283 = vld [vmem:[#allocation7 + $0x500] sm:$0xff]
    %v284 = vld [vmem:[#allocation7 + $0x508] sm:$0xff]
    %v285 = vld [vmem:[#allocation7 + $0x510] sm:$0xff]
    %v286 = vld [vmem:[#allocation7 + $0x518] sm:$0xff]
    %v287 = vld [vmem:[#allocation7 + $0x520] sm:$0xff]
    %v288 = vld [vmem:[#allocation7 + $0x528] sm:$0xff]
    %v289 = vld [vmem:[#allocation7 + $0x530] sm:$0xff]
    %v290 = vld [vmem:[#allocation7 + $0x538] sm:$0xff]
    %v291 = vld [vmem:[#allocation7 + $0x540] sm:$0xff]
    %v292 = vld [vmem:[#allocation7 + $0x548] sm:$0xff]
    %v293 = vld [vmem:[#allocation7 + $0x550] sm:$0xff]
    %v294 = vld [vmem:[#allocation7 + $0x558] sm:$0xff]
    %v295 = vld [vmem:[#allocation7 + $0x560] sm:$0xff]
    %v296 = vld [vmem:[#allocation7 + $0x568] sm:$0xff]
    %v297 = vld [vmem:[#allocation7 + $0x570] sm:$0xff]
    %v298 = vld [vmem:[#allocation7 + $0x578] sm:$0xff]
    %v299 = vld [vmem:[#allocation7 + $0x580] sm:$0xff]
    %v300 = vld [vmem:[#allocation7 + $0x588] sm:$0xff]
    %v301 = vld [vmem:[#allocation7 + $0x590] sm:$0xff]
    %v302 = vld [vmem:[#allocation7 + $0x598] sm:$0xff]
    %v303 = vld [vmem:[#allocation7 + $0x5a0] sm:$0xff]
    %v304 = vld [vmem:[#allocation7 + $0x5a8] sm:$0xff]
    %v305 = vld [vmem:[#allocation7 + $0x5b0] sm:$0xff]
    %v306 = vld [vmem:[#allocation7 + $0x5b8] sm:$0xff]
    %v307 = vld [vmem:[#allocation7 + $0x5c0] sm:$0xff]
    %v308 = vld [vmem:[#allocation7 + $0x5c8] sm:$0xff]
    %v309 = vld [vmem:[#allocation7 + $0x5d0] sm:$0xff]
    %v310 = vld [vmem:[#allocation7 + $0x5d8] sm:$0xff]
    %v311 = vld [vmem:[#allocation7 + $0x5e0] sm:$0xff]
    %v312 = vld [vmem:[#allocation7 + $0x5e8] sm:$0xff]
    %v313 = vld [vmem:[#allocation7 + $0x5f0] sm:$0xff]
    %v314 = vld [vmem:[#allocation7 + $0x5f8] sm:$0xff]
    %v315 = vld [vmem:[#allocation7 + $0x600] sm:$0xff]
    %v316 = vld [vmem:[#allocation7 + $0x608] sm:$0xff]
    %v317 = vld [vmem:[#allocation7 + $0x610] sm:$0xff]
    %v318 = vld [vmem:[#allocation7 + $0x618] sm:$0xff]
    %v319 = vld [vmem:[#allocation7 + $0x620] sm:$0xff]
    %v320 = vld [vmem:[#allocation7 + $0x628] sm:$0xff]
    %v321 = vld [vmem:[#allocation7 + $0x630] sm:$0xff]
    %v322 = vld [vmem:[#allocation7 + $0x638] sm:$0xff]
    %v323 = vld [vmem:[#allocation7 + $0x640] sm:$0xff]
    %v324 = vld [vmem:[#allocation7 + $0x648] sm:$0xff]
    %v325 = vld [vmem:[#allocation7 + $0x650] sm:$0xff]
    %v326 = vld [vmem:[#allocation7 + $0x658] sm:$0xff]
    %v327 = vld [vmem:[#allocation7 + $0x660] sm:$0xff]
    %v328 = vld [vmem:[#allocation7 + $0x668] sm:$0xff]
    %v329 = vld [vmem:[#allocation7 + $0x670] sm:$0xff]
    %v330 = vld [vmem:[#allocation7 + $0x678] sm:$0xff]
    %v331 = vld [vmem:[#allocation7 + $0x680] sm:$0xff]
    %v332 = vld [vmem:[#allocation7 + $0x688] sm:$0xff]
    %v333 = vld [vmem:[#allocation7 + $0x690] sm:$0xff]
    %v334 = vld [vmem:[#allocation7 + $0x698] sm:$0xff]
    %v335 = vld [vmem:[#allocation7 + $0x6a0] sm:$0xff]
    %v336 = vld [vmem:[#allocation7 + $0x6a8] sm:$0xff]
    %v337 = vld [vmem:[#allocation7 + $0x6b0] sm:$0xff]
    %v338 = vld [vmem:[#allocation7 + $0x6b8] sm:$0xff]
    %v339 = vld [vmem:[#allocation7 + $0x6c0] sm:$0xff]
    %v340 = vld [vmem:[#allocation7 + $0x6c8] sm:$0xff]
    %v341 = vld [vmem:[#allocation7 + $0x6d0] sm:$0xff]
    %v342 = vld [vmem:[#allocation7 + $0x6d8] sm:$0xff]
    %v343 = vld [vmem:[#allocation7 + $0x6e0] sm:$0xff]
    %v344 = vld [vmem:[#allocation7 + $0x6e8] sm:$0xff]
    %v345 = vld [vmem:[#allocation7 + $0x6f0] sm:$0xff]
    %v346 = vld [vmem:[#allocation7 + $0x6f8] sm:$0xff]
    %v347 = vld [vmem:[#allocation7 + $0x700] sm:$0xff]
    %v348 = vld [vmem:[#allocation7 + $0x708] sm:$0xff]
    %v349 = vld [vmem:[#allocation7 + $0x710] sm:$0xff]
    %v350 = vld [vmem:[#allocation7 + $0x718] sm:$0xff]
    %v351 = vld [vmem:[#allocation7 + $0x720] sm:$0xff]
    %v352 = vld [vmem:[#allocation7 + $0x728] sm:$0xff]
    %v353 = vld [vmem:[#allocation7 + $0x730] sm:$0xff]
    %v354 = vld [vmem:[#allocation7 + $0x738] sm:$0xff]
    %v355 = vld [vmem:[#allocation7 + $0x740] sm:$0xff]
    %v356 = vld [vmem:[#allocation7 + $0x748] sm:$0xff]
    %v357 = vld [vmem:[#allocation7 + $0x750] sm:$0xff]
    %v358 = vld [vmem:[#allocation7 + $0x758] sm:$0xff]
    %v359 = vld [vmem:[#allocation7 + $0x760] sm:$0xff]
    %v360 = vld [vmem:[#allocation7 + $0x768] sm:$0xff]
    %v361 = vld [vmem:[#allocation7 + $0x770] sm:$0xff]
    %v362 = vld [vmem:[#allocation7 + $0x778] sm:$0xff]
    %v363 = vld [vmem:[#allocation7 + $0x780] sm:$0xff]
    %v364 = vld [vmem:[#allocation7 + $0x788] sm:$0xff]
    %v365 = vld [vmem:[#allocation7 + $0x790] sm:$0xff]
    %v366 = vld [vmem:[#allocation7 + $0x798] sm:$0xff]
    %v367 = vld [vmem:[#allocation7 + $0x7a0] sm:$0xff]
    %v368 = vld [vmem:[#allocation7 + $0x7a8] sm:$0xff]
    %v369 = vld [vmem:[#allocation7 + $0x7b0] sm:$0xff]
    %v370 = vld [vmem:[#allocation7 + $0x7b8] sm:$0xff]
    %v371 = vld [vmem:[#allocation7 + $0x7c0] sm:$0xff]
    %v372 = vld [vmem:[#allocation7 + $0x7c8] sm:$0xff]
    %v373 = vld [vmem:[#allocation7 + $0x7d0] sm:$0xff]
    %v374 = vld [vmem:[#allocation7 + $0x7d8] sm:$0xff]
    %v375 = vld [vmem:[#allocation7 + $0x7e0] sm:$0xff]
    %v376 = vld [vmem:[#allocation7 + $0x7e8] sm:$0xff]
    %v377 = vld [vmem:[#allocation7 + $0x7f0] sm:$0xff]
    %v378 = vld [vmem:[#allocation7 + $0x7f8] sm:$0xff]
    %v635 = vunpack.c.l.b16 %v123
    %v636 = vunpack.c.h.b16 %v123
    %v637 = vunpack.c.l.b16 %v124
    %v638 = vunpack.c.h.b16 %v124
    %v639 = vunpack.c.l.b16 %v125
    %v640 = vunpack.c.h.b16 %v125
    %v641 = vunpack.c.l.b16 %v126
    %v642 = vunpack.c.h.b16 %v126
    %v643 = vunpack.c.l.b16 %v127
    %v644 = vunpack.c.h.b16 %v127
    %v645 = vunpack.c.l.b16 %v128
    %v646 = vunpack.c.h.b16 %v128
    %v647 = vunpack.c.l.b16 %v129
    %v648 = vunpack.c.h.b16 %v129
    %v649 = vunpack.c.l.b16 %v130
    %v650 = vunpack.c.h.b16 %v130
    %v651 = vunpack.c.l.b16 %v131
    %v652 = vunpack.c.h.b16 %v131
    %v653 = vunpack.c.l.b16 %v132
    %v654 = vunpack.c.h.b16 %v132
    %v655 = vunpack.c.l.b16 %v133
    %v656 = vunpack.c.h.b16 %v133
    %v657 = vunpack.c.l.b16 %v134
    %v658 = vunpack.c.h.b16 %v134
    %v659 = vunpack.c.l.b16 %v135
    %v660 = vunpack.c.h.b16 %v135
    %v661 = vunpack.c.l.b16 %v136
    %v662 = vunpack.c.h.b16 %v136
    %v663 = vunpack.c.l.b16 %v137
    %v664 = vunpack.c.h.b16 %v137
    %v665 = vunpack.c.l.b16 %v138
    %v666 = vunpack.c.h.b16 %v138
    %v667 = vunpack.c.l.b16 %v139
    %v668 = vunpack.c.h.b16 %v139
    %v669 = vunpack.c.l.b16 %v140
    %v670 = vunpack.c.h.b16 %v140
    %v671 = vunpack.c.l.b16 %v141
    %v672 = vunpack.c.h.b16 %v141
    %v673 = vunpack.c.l.b16 %v142
    %v674 = vunpack.c.h.b16 %v142
    %v675 = vunpack.c.l.b16 %v143
    %v676 = vunpack.c.h.b16 %v143
    %v677 = vunpack.c.l.b16 %v144
    %v678 = vunpack.c.h.b16 %v144
    %v679 = vunpack.c.l.b16 %v145
    %v680 = vunpack.c.h.b16 %v145
    %v681 = vunpack.c.l.b16 %v146
    %v682 = vunpack.c.h.b16 %v146
    %v683 = vunpack.c.l.b16 %v147
    %v684 = vunpack.c.h.b16 %v147
    %v685 = vunpack.c.l.b16 %v148
    %v686 = vunpack.c.h.b16 %v148
    %v687 = vunpack.c.l.b16 %v149
    %v688 = vunpack.c.h.b16 %v149
    %v689 = vunpack.c.l.b16 %v150
    %v690 = vunpack.c.h.b16 %v150
    %v691 = vunpack.c.l.b16 %v151
    %v692 = vunpack.c.h.b16 %v151
    %v693 = vunpack.c.l.b16 %v152
    %v694 = vunpack.c.h.b16 %v152
    %v695 = vunpack.c.l.b16 %v153
    %v696 = vunpack.c.h.b16 %v153
    %v697 = vunpack.c.l.b16 %v154
    %v698 = vunpack.c.h.b16 %v154
    %v699 = vunpack.c.l.b16 %v155
    %v700 = vunpack.c.h.b16 %v155
    %v701 = vunpack.c.l.b16 %v156
    %v702 = vunpack.c.h.b16 %v156
    %v703 = vunpack.c.l.b16 %v157
    %v704 = vunpack.c.h.b16 %v157
    %v705 = vunpack.c.l.b16 %v158
    %v706 = vunpack.c.h.b16 %v158
    %v707 = vunpack.c.l.b16 %v159
    %v708 = vunpack.c.h.b16 %v159
    %v709 = vunpack.c.l.b16 %v160
    %v710 = vunpack.c.h.b16 %v160
    %v711 = vunpack.c.l.b16 %v161
    %v712 = vunpack.c.h.b16 %v161
    %v713 = vunpack.c.l.b16 %v162
    %v714 = vunpack.c.h.b16 %v162
    %v715 = vunpack.c.l.b16 %v163
    %v716 = vunpack.c.h.b16 %v163
    %v717 = vunpack.c.l.b16 %v164
    %v718 = vunpack.c.h.b16 %v164
    %v719 = vunpack.c.l.b16 %v165
    %v720 = vunpack.c.h.b16 %v165
    %v721 = vunpack.c.l.b16 %v166
    %v722 = vunpack.c.h.b16 %v166
    %v723 = vunpack.c.l.b16 %v167
    %v724 = vunpack.c.h.b16 %v167
    %v725 = vunpack.c.l.b16 %v168
    %v726 = vunpack.c.h.b16 %v168
    %v727 = vunpack.c.l.b16 %v169
    %v728 = vunpack.c.h.b16 %v169
    %v729 = vunpack.c.l.b16 %v170
    %v730 = vunpack.c.h.b16 %v170
    %v731 = vunpack.c.l.b16 %v171
    %v732 = vunpack.c.h.b16 %v171
    %v733 = vunpack.c.l.b16 %v172
    %v734 = vunpack.c.h.b16 %v172
    %v735 = vunpack.c.l.b16 %v173
    %v736 = vunpack.c.h.b16 %v173
    %v737 = vunpack.c.l.b16 %v174
    %v738 = vunpack.c.h.b16 %v174
    %v739 = vunpack.c.l.b16 %v175
    %v740 = vunpack.c.h.b16 %v175
    %v741 = vunpack.c.l.b16 %v176
    %v742 = vunpack.c.h.b16 %v176
    %v743 = vunpack.c.l.b16 %v177
    %v744 = vunpack.c.h.b16 %v177
    %v745 = vunpack.c.l.b16 %v178
    %v746 = vunpack.c.h.b16 %v178
    %v747 = vunpack.c.l.b16 %v179
    %v748 = vunpack.c.h.b16 %v179
    %v749 = vunpack.c.l.b16 %v180
    %v750 = vunpack.c.h.b16 %v180
    %v751 = vunpack.c.l.b16 %v181
    %v752 = vunpack.c.h.b16 %v181
    %v753 = vunpack.c.l.b16 %v182
    %v754 = vunpack.c.h.b16 %v182
    %v755 = vunpack.c.l.b16 %v183
    %v756 = vunpack.c.h.b16 %v183
    %v757 = vunpack.c.l.b16 %v184
    %v758 = vunpack.c.h.b16 %v184
    %v759 = vunpack.c.l.b16 %v185
    %v760 = vunpack.c.h.b16 %v185
    %v761 = vunpack.c.l.b16 %v186
    %v762 = vunpack.c.h.b16 %v186
    %v763 = vunpack.c.l.b16 %v187
    %v764 = vunpack.c.h.b16 %v187
    %v765 = vunpack.c.l.b16 %v188
    %v766 = vunpack.c.h.b16 %v188
    %v767 = vunpack.c.l.b16 %v189
    %v768 = vunpack.c.h.b16 %v189
    %v769 = vunpack.c.l.b16 %v190
    %v770 = vunpack.c.h.b16 %v190
    %v771 = vunpack.c.l.b16 %v191
    %v772 = vunpack.c.h.b16 %v191
    %v773 = vunpack.c.l.b16 %v192
    %v774 = vunpack.c.h.b16 %v192
    %v775 = vunpack.c.l.b16 %v193
    %v776 = vunpack.c.h.b16 %v193
    %v777 = vunpack.c.l.b16 %v194
    %v778 = vunpack.c.h.b16 %v194
    %v779 = vunpack.c.l.b16 %v195
    %v780 = vunpack.c.h.b16 %v195
    %v781 = vunpack.c.l.b16 %v196
    %v782 = vunpack.c.h.b16 %v196
    %v783 = vunpack.c.l.b16 %v197
    %v784 = vunpack.c.h.b16 %v197
    %v785 = vunpack.c.l.b16 %v198
    %v786 = vunpack.c.h.b16 %v198
    %v787 = vunpack.c.l.b16 %v199
    %v788 = vunpack.c.h.b16 %v199
    %v789 = vunpack.c.l.b16 %v200
    %v790 = vunpack.c.h.b16 %v200
    %v791 = vunpack.c.l.b16 %v201
    %v792 = vunpack.c.h.b16 %v201
    %v793 = vunpack.c.l.b16 %v202
    %v794 = vunpack.c.h.b16 %v202
    %v795 = vunpack.c.l.b16 %v203
    %v796 = vunpack.c.h.b16 %v203
    %v797 = vunpack.c.l.b16 %v204
    %v798 = vunpack.c.h.b16 %v204
    %v799 = vunpack.c.l.b16 %v205
    %v800 = vunpack.c.h.b16 %v205
    %v801 = vunpack.c.l.b16 %v206
    %v802 = vunpack.c.h.b16 %v206
    %v803 = vunpack.c.l.b16 %v207
    %v804 = vunpack.c.h.b16 %v207
    %v805 = vunpack.c.l.b16 %v208
    %v806 = vunpack.c.h.b16 %v208
    %v807 = vunpack.c.l.b16 %v209
    %v808 = vunpack.c.h.b16 %v209
    %v809 = vunpack.c.l.b16 %v210
    %v810 = vunpack.c.h.b16 %v210
    %v811 = vunpack.c.l.b16 %v211
    %v812 = vunpack.c.h.b16 %v211
    %v813 = vunpack.c.l.b16 %v212
    %v814 = vunpack.c.h.b16 %v212
    %v815 = vunpack.c.l.b16 %v213
    %v816 = vunpack.c.h.b16 %v213
    %v817 = vunpack.c.l.b16 %v214
    %v818 = vunpack.c.h.b16 %v214
    %v819 = vunpack.c.l.b16 %v215
    %v820 = vunpack.c.h.b16 %v215
    %v821 = vunpack.c.l.b16 %v216
    %v822 = vunpack.c.h.b16 %v216
    %v823 = vunpack.c.l.b16 %v217
    %v824 = vunpack.c.h.b16 %v217
    %v825 = vunpack.c.l.b16 %v218
    %v826 = vunpack.c.h.b16 %v218
    %v827 = vunpack.c.l.b16 %v219
    %v828 = vunpack.c.h.b16 %v219
    %v829 = vunpack.c.l.b16 %v220
    %v830 = vunpack.c.h.b16 %v220
    %v831 = vunpack.c.l.b16 %v221
    %v832 = vunpack.c.h.b16 %v221
    %v833 = vunpack.c.l.b16 %v222
    %v834 = vunpack.c.h.b16 %v222
    %v835 = vunpack.c.l.b16 %v223
    %v836 = vunpack.c.h.b16 %v223
    %v837 = vunpack.c.l.b16 %v224
    %v838 = vunpack.c.h.b16 %v224
    %v839 = vunpack.c.l.b16 %v225
    %v840 = vunpack.c.h.b16 %v225
    %v841 = vunpack.c.l.b16 %v226
    %v842 = vunpack.c.h.b16 %v226
    %v843 = vunpack.c.l.b16 %v227
    %v844 = vunpack.c.h.b16 %v227
    %v845 = vunpack.c.l.b16 %v228
    %v846 = vunpack.c.h.b16 %v228
    %v847 = vunpack.c.l.b16 %v229
    %v848 = vunpack.c.h.b16 %v229
    %v849 = vunpack.c.l.b16 %v230
    %v850 = vunpack.c.h.b16 %v230
    %v851 = vunpack.c.l.b16 %v231
    %v852 = vunpack.c.h.b16 %v231
    %v853 = vunpack.c.l.b16 %v232
    %v854 = vunpack.c.h.b16 %v232
    %v855 = vunpack.c.l.b16 %v233
    %v856 = vunpack.c.h.b16 %v233
    %v857 = vunpack.c.l.b16 %v234
    %v858 = vunpack.c.h.b16 %v234
    %v859 = vunpack.c.l.b16 %v235
    %v860 = vunpack.c.h.b16 %v235
    %v861 = vunpack.c.l.b16 %v236
    %v862 = vunpack.c.h.b16 %v236
    %v863 = vunpack.c.l.b16 %v237
    %v864 = vunpack.c.h.b16 %v237
    %v865 = vunpack.c.l.b16 %v238
    %v866 = vunpack.c.h.b16 %v238
    %v867 = vunpack.c.l.b16 %v239
    %v868 = vunpack.c.h.b16 %v239
    %v869 = vunpack.c.l.b16 %v240
    %v870 = vunpack.c.h.b16 %v240
    %v871 = vunpack.c.l.b16 %v241
    %v872 = vunpack.c.h.b16 %v241
    %v873 = vunpack.c.l.b16 %v242
    %v874 = vunpack.c.h.b16 %v242
    %v875 = vunpack.c.l.b16 %v243
    %v876 = vunpack.c.h.b16 %v243
    %v877 = vunpack.c.l.b16 %v244
    %v878 = vunpack.c.h.b16 %v244
    %v879 = vunpack.c.l.b16 %v245
    %v880 = vunpack.c.h.b16 %v245
    %v881 = vunpack.c.l.b16 %v246
    %v882 = vunpack.c.h.b16 %v246
    %v883 = vunpack.c.l.b16 %v247
    %v884 = vunpack.c.h.b16 %v247
    %v885 = vunpack.c.l.b16 %v248
    %v886 = vunpack.c.h.b16 %v248
    %v887 = vunpack.c.l.b16 %v249
    %v888 = vunpack.c.h.b16 %v249
    %v889 = vunpack.c.l.b16 %v250
    %v890 = vunpack.c.h.b16 %v250
    %v891 = vunpack.c.l.b16 %v251
    %v892 = vunpack.c.h.b16 %v251
    %v893 = vunpack.c.l.b16 %v252
    %v894 = vunpack.c.h.b16 %v252
    %v895 = vunpack.c.l.b16 %v253
    %v896 = vunpack.c.h.b16 %v253
    %v897 = vunpack.c.l.b16 %v254
    %v898 = vunpack.c.h.b16 %v254
    %v899 = vunpack.c.l.b16 %v255
    %v900 = vunpack.c.h.b16 %v255
    %v901 = vunpack.c.l.b16 %v256
    %v902 = vunpack.c.h.b16 %v256
    %v903 = vunpack.c.l.b16 %v257
    %v904 = vunpack.c.h.b16 %v257
    %v905 = vunpack.c.l.b16 %v258
    %v906 = vunpack.c.h.b16 %v258
    %v907 = vunpack.c.l.b16 %v259
    %v908 = vunpack.c.h.b16 %v259
    %v909 = vunpack.c.l.b16 %v260
    %v910 = vunpack.c.h.b16 %v260
    %v911 = vunpack.c.l.b16 %v261
    %v912 = vunpack.c.h.b16 %v261
    %v913 = vunpack.c.l.b16 %v262
    %v914 = vunpack.c.h.b16 %v262
    %v915 = vunpack.c.l.b16 %v263
    %v916 = vunpack.c.h.b16 %v263
    %v917 = vunpack.c.l.b16 %v264
    %v918 = vunpack.c.h.b16 %v264
    %v919 = vunpack.c.l.b16 %v265
    %v920 = vunpack.c.h.b16 %v265
    %v921 = vunpack.c.l.b16 %v266
    %v922 = vunpack.c.h.b16 %v266
    %v923 = vunpack.c.l.b16 %v267
    %v924 = vunpack.c.h.b16 %v267
    %v925 = vunpack.c.l.b16 %v268
    %v926 = vunpack.c.h.b16 %v268
    %v927 = vunpack.c.l.b16 %v269
    %v928 = vunpack.c.h.b16 %v269
    %v929 = vunpack.c.l.b16 %v270
    %v930 = vunpack.c.h.b16 %v270
    %v931 = vunpack.c.l.b16 %v271
    %v932 = vunpack.c.h.b16 %v271
    %v933 = vunpack.c.l.b16 %v272
    %v934 = vunpack.c.h.b16 %v272
    %v935 = vunpack.c.l.b16 %v273
    %v936 = vunpack.c.h.b16 %v273
    %v937 = vunpack.c.l.b16 %v274
    %v938 = vunpack.c.h.b16 %v274
    %v939 = vunpack.c.l.b16 %v275
    %v940 = vunpack.c.h.b16 %v275
    %v941 = vunpack.c.l.b16 %v276
    %v942 = vunpack.c.h.b16 %v276
    %v943 = vunpack.c.l.b16 %v277
    %v944 = vunpack.c.h.b16 %v277
    %v945 = vunpack.c.l.b16 %v278
    %v946 = vunpack.c.h.b16 %v278
    %v947 = vunpack.c.l.b16 %v279
    %v948 = vunpack.c.h.b16 %v279
    %v949 = vunpack.c.l.b16 %v280
    %v950 = vunpack.c.h.b16 %v280
    %v951 = vunpack.c.l.b16 %v281
    %v952 = vunpack.c.h.b16 %v281
    %v953 = vunpack.c.l.b16 %v282
    %v954 = vunpack.c.h.b16 %v282
    %v955 = vunpack.c.l.b16 %v283
    %v956 = vunpack.c.h.b16 %v283
    %v957 = vunpack.c.l.b16 %v284
    %v958 = vunpack.c.h.b16 %v284
    %v959 = vunpack.c.l.b16 %v285
    %v960 = vunpack.c.h.b16 %v285
    %v961 = vunpack.c.l.b16 %v286
    %v962 = vunpack.c.h.b16 %v286
    %v963 = vunpack.c.l.b16 %v287
    %v964 = vunpack.c.h.b16 %v287
    %v965 = vunpack.c.l.b16 %v288
    %v966 = vunpack.c.h.b16 %v288
    %v967 = vunpack.c.l.b16 %v289
    %v968 = vunpack.c.h.b16 %v289
    %v969 = vunpack.c.l.b16 %v290
    %v970 = vunpack.c.h.b16 %v290
    %v971 = vunpack.c.l.b16 %v291
    %v972 = vunpack.c.h.b16 %v291
    %v973 = vunpack.c.l.b16 %v292
    %v974 = vunpack.c.h.b16 %v292
    %v975 = vunpack.c.l.b16 %v293
    %v976 = vunpack.c.h.b16 %v293
    %v977 = vunpack.c.l.b16 %v294
    %v978 = vunpack.c.h.b16 %v294
    %v979 = vunpack.c.l.b16 %v295
    %v980 = vunpack.c.h.b16 %v295
    %v981 = vunpack.c.l.b16 %v296
    %v982 = vunpack.c.h.b16 %v296
    %v983 = vunpack.c.l.b16 %v297
    %v984 = vunpack.c.h.b16 %v297
    %v985 = vunpack.c.l.b16 %v298
    %v986 = vunpack.c.h.b16 %v298
    %v987 = vunpack.c.l.b16 %v299
    %v988 = vunpack.c.h.b16 %v299
    %v989 = vunpack.c.l.b16 %v300
    %v990 = vunpack.c.h.b16 %v300
    %v991 = vunpack.c.l.b16 %v301
    %v992 = vunpack.c.h.b16 %v301
    %v993 = vunpack.c.l.b16 %v302
    %v994 = vunpack.c.h.b16 %v302
    %v995 = vunpack.c.l.b16 %v303
    %v996 = vunpack.c.h.b16 %v303
    %v997 = vunpack.c.l.b16 %v304
    %v998 = vunpack.c.h.b16 %v304
    %v999 = vunpack.c.l.b16 %v305
    %v1000 = vunpack.c.h.b16 %v305
    %v1001 = vunpack.c.l.b16 %v306
    %v1002 = vunpack.c.h.b16 %v306
    %v1003 = vunpack.c.l.b16 %v307
    %v1004 = vunpack.c.h.b16 %v307
    %v1005 = vunpack.c.l.b16 %v308
    %v1006 = vunpack.c.h.b16 %v308
    %v1007 = vunpack.c.l.b16 %v309
    %v1008 = vunpack.c.h.b16 %v309
    %v1009 = vunpack.c.l.b16 %v310
    %v1010 = vunpack.c.h.b16 %v310
    %v1011 = vunpack.c.l.b16 %v311
    %v1012 = vunpack.c.h.b16 %v311
    %v1013 = vunpack.c.l.b16 %v312
    %v1014 = vunpack.c.h.b16 %v312
    %v1015 = vunpack.c.l.b16 %v313
    %v1016 = vunpack.c.h.b16 %v313
    %v1017 = vunpack.c.l.b16 %v314
    %v1018 = vunpack.c.h.b16 %v314
    %v1019 = vunpack.c.l.b16 %v315
    %v1020 = vunpack.c.h.b16 %v315
    %v1021 = vunpack.c.l.b16 %v316
    %v1022 = vunpack.c.h.b16 %v316
    %v1023 = vunpack.c.l.b16 %v317
    %v1024 = vunpack.c.h.b16 %v317
    %v1025 = vunpack.c.l.b16 %v318
    %v1026 = vunpack.c.h.b16 %v318
    %v1027 = vunpack.c.l.b16 %v319
    %v1028 = vunpack.c.h.b16 %v319
    %v1029 = vunpack.c.l.b16 %v320
    %v1030 = vunpack.c.h.b16 %v320
    %v1031 = vunpack.c.l.b16 %v321
    %v1032 = vunpack.c.h.b16 %v321
    %v1033 = vunpack.c.l.b16 %v322
    %v1034 = vunpack.c.h.b16 %v322
    %v1035 = vunpack.c.l.b16 %v323
    %v1036 = vunpack.c.h.b16 %v323
    %v1037 = vunpack.c.l.b16 %v324
    %v1038 = vunpack.c.h.b16 %v324
    %v1039 = vunpack.c.l.b16 %v325
    %v1040 = vunpack.c.h.b16 %v325
    %v1041 = vunpack.c.l.b16 %v326
    %v1042 = vunpack.c.h.b16 %v326
    %v1043 = vunpack.c.l.b16 %v327
    %v1044 = vunpack.c.h.b16 %v327
    %v1045 = vunpack.c.l.b16 %v328
    %v1046 = vunpack.c.h.b16 %v328
    %v1047 = vunpack.c.l.b16 %v329
    %v1048 = vunpack.c.h.b16 %v329
    %v1049 = vunpack.c.l.b16 %v330
    %v1050 = vunpack.c.h.b16 %v330
    %v1051 = vunpack.c.l.b16 %v331
    %v1052 = vunpack.c.h.b16 %v331
    %v1053 = vunpack.c.l.b16 %v332
    %v1054 = vunpack.c.h.b16 %v332
    %v1055 = vunpack.c.l.b16 %v333
    %v1056 = vunpack.c.h.b16 %v333
    %v1057 = vunpack.c.l.b16 %v334
    %v1058 = vunpack.c.h.b16 %v334
    %v1059 = vunpack.c.l.b16 %v335
    %v1060 = vunpack.c.h.b16 %v335
    %v1061 = vunpack.c.l.b16 %v336
    %v1062 = vunpack.c.h.b16 %v336
    %v1063 = vunpack.c.l.b16 %v337
    %v1064 = vunpack.c.h.b16 %v337
    %v1065 = vunpack.c.l.b16 %v338
    %v1066 = vunpack.c.h.b16 %v338
    %v1067 = vunpack.c.l.b16 %v339
    %v1068 = vunpack.c.h.b16 %v339
    %v1069 = vunpack.c.l.b16 %v340
    %v1070 = vunpack.c.h.b16 %v340
    %v1071 = vunpack.c.l.b16 %v341
    %v1072 = vunpack.c.h.b16 %v341
    %v1073 = vunpack.c.l.b16 %v342
    %v1074 = vunpack.c.h.b16 %v342
    %v1075 = vunpack.c.l.b16 %v343
    %v1076 = vunpack.c.h.b16 %v343
    %v1077 = vunpack.c.l.b16 %v344
    %v1078 = vunpack.c.h.b16 %v344
    %v1079 = vunpack.c.l.b16 %v345
    %v1080 = vunpack.c.h.b16 %v345
    %v1081 = vunpack.c.l.b16 %v346
    %v1082 = vunpack.c.h.b16 %v346
    %v1083 = vunpack.c.l.b16 %v347
    %v1084 = vunpack.c.h.b16 %v347
    %v1085 = vunpack.c.l.b16 %v348
    %v1086 = vunpack.c.h.b16 %v348
    %v1087 = vunpack.c.l.b16 %v349
    %v1088 = vunpack.c.h.b16 %v349
    %v1089 = vunpack.c.l.b16 %v350
    %v1090 = vunpack.c.h.b16 %v350
    %v1091 = vunpack.c.l.b16 %v351
    %v1092 = vunpack.c.h.b16 %v351
    %v1093 = vunpack.c.l.b16 %v352
    %v1094 = vunpack.c.h.b16 %v352
    %v1095 = vunpack.c.l.b16 %v353
    %v1096 = vunpack.c.h.b16 %v353
    %v1097 = vunpack.c.l.b16 %v354
    %v1098 = vunpack.c.h.b16 %v354
    %v1099 = vunpack.c.l.b16 %v355
    %v1100 = vunpack.c.h.b16 %v355
    %v1101 = vunpack.c.l.b16 %v356
    %v1102 = vunpack.c.h.b16 %v356
    %v1103 = vunpack.c.l.b16 %v357
    %v1104 = vunpack.c.h.b16 %v357
    %v1105 = vunpack.c.l.b16 %v358
    %v1106 = vunpack.c.h.b16 %v358
    %v1107 = vunpack.c.l.b16 %v359
    %v1108 = vunpack.c.h.b16 %v359
    %v1109 = vunpack.c.l.b16 %v360
    %v1110 = vunpack.c.h.b16 %v360
    %v1111 = vunpack.c.l.b16 %v361
    %v1112 = vunpack.c.h.b16 %v361
    %v1113 = vunpack.c.l.b16 %v362
    %v1114 = vunpack.c.h.b16 %v362
    %v1115 = vunpack.c.l.b16 %v363
    %v1116 = vunpack.c.h.b16 %v363
    %v1117 = vunpack.c.l.b16 %v364
    %v1118 = vunpack.c.h.b16 %v364
    %v1119 = vunpack.c.l.b16 %v365
    %v1120 = vunpack.c.h.b16 %v365
    %v1121 = vunpack.c.l.b16 %v366
    %v1122 = vunpack.c.h.b16 %v366
    %v1123 = vunpack.c.l.b16 %v367
    %v1124 = vunpack.c.h.b16 %v367
    %v1125 = vunpack.c.l.b16 %v368
    %v1126 = vunpack.c.h.b16 %v368
    %v1127 = vunpack.c.l.b16 %v369
    %v1128 = vunpack.c.h.b16 %v369
    %v1129 = vunpack.c.l.b16 %v370
    %v1130 = vunpack.c.h.b16 %v370
    %v1131 = vunpack.c.l.b16 %v371
    %v1132 = vunpack.c.h.b16 %v371
    %v1133 = vunpack.c.l.b16 %v372
    %v1134 = vunpack.c.h.b16 %v372
    %v1135 = vunpack.c.l.b16 %v373
    %v1136 = vunpack.c.h.b16 %v373
    %v1137 = vunpack.c.l.b16 %v374
    %v1138 = vunpack.c.h.b16 %v374
    %v1139 = vunpack.c.l.b16 %v375
    %v1140 = vunpack.c.h.b16 %v375
    %v1141 = vunpack.c.l.b16 %v376
    %v1142 = vunpack.c.h.b16 %v376
    %v1143 = vunpack.c.l.b16 %v377
    %v1144 = vunpack.c.h.b16 %v377
    %v1145 = vunpack.c.l.b16 %v378
    %v1146 = vunpack.c.h.b16 %v378
    %v1147 = vpack.c.b16 %v639, %v635
    %v1148 = vpack.c.b16 %v640, %v636
    %v1149 = vpack.c.b16 %v641, %v637
    %v1150 = vpack.c.b16 %v642, %v638
    %v1151 = vpack.c.b16 %v647, %v643
    %v1152 = vpack.c.b16 %v648, %v644
    %v1153 = vpack.c.b16 %v649, %v645
    %v1154 = vpack.c.b16 %v650, %v646
    %v1155 = vpack.c.b16 %v655, %v651
    %v1156 = vpack.c.b16 %v656, %v652
    %v1157 = vpack.c.b16 %v657, %v653
    %v1158 = vpack.c.b16 %v658, %v654
    %v1159 = vpack.c.b16 %v663, %v659
    %v1160 = vpack.c.b16 %v664, %v660
    %v1161 = vpack.c.b16 %v665, %v661
    %v1162 = vpack.c.b16 %v666, %v662
    %v1163 = vpack.c.b16 %v671, %v667
    %v1164 = vpack.c.b16 %v672, %v668
    %v1165 = vpack.c.b16 %v673, %v669
    %v1166 = vpack.c.b16 %v674, %v670
    %v1167 = vpack.c.b16 %v679, %v675
    %v1168 = vpack.c.b16 %v680, %v676
    %v1169 = vpack.c.b16 %v681, %v677
    %v1170 = vpack.c.b16 %v682, %v678
    %v1171 = vpack.c.b16 %v687, %v683
    %v1172 = vpack.c.b16 %v688, %v684
    %v1173 = vpack.c.b16 %v689, %v685
    %v1174 = vpack.c.b16 %v690, %v686
    %v1175 = vpack.c.b16 %v695, %v691
    %v1176 = vpack.c.b16 %v696, %v692
    %v1177 = vpack.c.b16 %v697, %v693
    %v1178 = vpack.c.b16 %v698, %v694
    %v1179 = vpack.c.b16 %v703, %v699
    %v1180 = vpack.c.b16 %v704, %v700
    %v1181 = vpack.c.b16 %v705, %v701
    %v1182 = vpack.c.b16 %v706, %v702
    %v1183 = vpack.c.b16 %v711, %v707
    %v1184 = vpack.c.b16 %v712, %v708
    %v1185 = vpack.c.b16 %v713, %v709
    %v1186 = vpack.c.b16 %v714, %v710
    %v1187 = vpack.c.b16 %v719, %v715
    %v1188 = vpack.c.b16 %v720, %v716
    %v1189 = vpack.c.b16 %v721, %v717
    %v1190 = vpack.c.b16 %v722, %v718
    %v1191 = vpack.c.b16 %v727, %v723
    %v1192 = vpack.c.b16 %v728, %v724
    %v1193 = vpack.c.b16 %v729, %v725
    %v1194 = vpack.c.b16 %v730, %v726
    %v1195 = vpack.c.b16 %v735, %v731
    %v1196 = vpack.c.b16 %v736, %v732
    %v1197 = vpack.c.b16 %v737, %v733
    %v1198 = vpack.c.b16 %v738, %v734
    %v1199 = vpack.c.b16 %v743, %v739
    %v1200 = vpack.c.b16 %v744, %v740
    %v1201 = vpack.c.b16 %v745, %v741
    %v1202 = vpack.c.b16 %v746, %v742
    %v1203 = vpack.c.b16 %v751, %v747
    %v1204 = vpack.c.b16 %v752, %v748
    %v1205 = vpack.c.b16 %v753, %v749
    %v1206 = vpack.c.b16 %v754, %v750
    %v1207 = vpack.c.b16 %v759, %v755
    %v1208 = vpack.c.b16 %v760, %v756
    %v1209 = vpack.c.b16 %v761, %v757
    %v1210 = vpack.c.b16 %v762, %v758
    %v1211 = vpack.c.b16 %v767, %v763
    %v1212 = vpack.c.b16 %v768, %v764
    %v1213 = vpack.c.b16 %v769, %v765
    %v1214 = vpack.c.b16 %v770, %v766
    %v1215 = vpack.c.b16 %v775, %v771
    %v1216 = vpack.c.b16 %v776, %v772
    %v1217 = vpack.c.b16 %v777, %v773
    %v1218 = vpack.c.b16 %v778, %v774
    %v1219 = vpack.c.b16 %v783, %v779
    %v1220 = vpack.c.b16 %v784, %v780
    %v1221 = vpack.c.b16 %v785, %v781
    %v1222 = vpack.c.b16 %v786, %v782
    %v1223 = vpack.c.b16 %v791, %v787
    %v1224 = vpack.c.b16 %v792, %v788
    %v1225 = vpack.c.b16 %v793, %v789
    %v1226 = vpack.c.b16 %v794, %v790
    %v1227 = vpack.c.b16 %v799, %v795
    %v1228 = vpack.c.b16 %v800, %v796
    %v1229 = vpack.c.b16 %v801, %v797
    %v1230 = vpack.c.b16 %v802, %v798
    %v1231 = vpack.c.b16 %v807, %v803
    %v1232 = vpack.c.b16 %v808, %v804
    %v1233 = vpack.c.b16 %v809, %v805
    %v1234 = vpack.c.b16 %v810, %v806
    %v1235 = vpack.c.b16 %v815, %v811
    %v1236 = vpack.c.b16 %v816, %v812
    %v1237 = vpack.c.b16 %v817, %v813
    %v1238 = vpack.c.b16 %v818, %v814
    %v1239 = vpack.c.b16 %v823, %v819
    %v1240 = vpack.c.b16 %v824, %v820
    %v1241 = vpack.c.b16 %v825, %v821
    %v1242 = vpack.c.b16 %v826, %v822
    %v1243 = vpack.c.b16 %v831, %v827
    %v1244 = vpack.c.b16 %v832, %v828
    %v1245 = vpack.c.b16 %v833, %v829
    %v1246 = vpack.c.b16 %v834, %v830
    %v1247 = vpack.c.b16 %v839, %v835
    %v1248 = vpack.c.b16 %v840, %v836
    %v1249 = vpack.c.b16 %v841, %v837
    %v1250 = vpack.c.b16 %v842, %v838
    %v1251 = vpack.c.b16 %v847, %v843
    %v1252 = vpack.c.b16 %v848, %v844
    %v1253 = vpack.c.b16 %v849, %v845
    %v1254 = vpack.c.b16 %v850, %v846
    %v1255 = vpack.c.b16 %v855, %v851
    %v1256 = vpack.c.b16 %v856, %v852
    %v1257 = vpack.c.b16 %v857, %v853
    %v1258 = vpack.c.b16 %v858, %v854
    %v1259 = vpack.c.b16 %v863, %v859
    %v1260 = vpack.c.b16 %v864, %v860
    %v1261 = vpack.c.b16 %v865, %v861
    %v1262 = vpack.c.b16 %v866, %v862
    %v1263 = vpack.c.b16 %v871, %v867
    %v1264 = vpack.c.b16 %v872, %v868
    %v1265 = vpack.c.b16 %v873, %v869
    %v1266 = vpack.c.b16 %v874, %v870
    %v1267 = vpack.c.b16 %v879, %v875
    %v1268 = vpack.c.b16 %v880, %v876
    %v1269 = vpack.c.b16 %v881, %v877
    %v1270 = vpack.c.b16 %v882, %v878
    %v1271 = vpack.c.b16 %v887, %v883
    %v1272 = vpack.c.b16 %v888, %v884
    %v1273 = vpack.c.b16 %v889, %v885
    %v1274 = vpack.c.b16 %v890, %v886
    %v1275 = vpack.c.b16 %v895, %v891
    %v1276 = vpack.c.b16 %v896, %v892
    %v1277 = vpack.c.b16 %v897, %v893
    %v1278 = vpack.c.b16 %v898, %v894
    %v1279 = vpack.c.b16 %v903, %v899
    %v1280 = vpack.c.b16 %v904, %v900
    %v1281 = vpack.c.b16 %v905, %v901
    %v1282 = vpack.c.b16 %v906, %v902
    %v1283 = vpack.c.b16 %v911, %v907
    %v1284 = vpack.c.b16 %v912, %v908
    %v1285 = vpack.c.b16 %v913, %v909
    %v1286 = vpack.c.b16 %v914, %v910
    %v1287 = vpack.c.b16 %v919, %v915
    %v1288 = vpack.c.b16 %v920, %v916
    %v1289 = vpack.c.b16 %v921, %v917
    %v1290 = vpack.c.b16 %v922, %v918
    %v1291 = vpack.c.b16 %v927, %v923
    %v1292 = vpack.c.b16 %v928, %v924
    %v1293 = vpack.c.b16 %v929, %v925
    %v1294 = vpack.c.b16 %v930, %v926
    %v1295 = vpack.c.b16 %v935, %v931
    %v1296 = vpack.c.b16 %v936, %v932
    %v1297 = vpack.c.b16 %v937, %v933
    %v1298 = vpack.c.b16 %v938, %v934
    %v1299 = vpack.c.b16 %v943, %v939
    %v1300 = vpack.c.b16 %v944, %v940
    %v1301 = vpack.c.b16 %v945, %v941
    %v1302 = vpack.c.b16 %v946, %v942
    %v1303 = vpack.c.b16 %v951, %v947
    %v1304 = vpack.c.b16 %v952, %v948
    %v1305 = vpack.c.b16 %v953, %v949
    %v1306 = vpack.c.b16 %v954, %v950
    %v1307 = vpack.c.b16 %v959, %v955
    %v1308 = vpack.c.b16 %v960, %v956
    %v1309 = vpack.c.b16 %v961, %v957
    %v1310 = vpack.c.b16 %v962, %v958
    %v1311 = vpack.c.b16 %v967, %v963
    %v1312 = vpack.c.b16 %v968, %v964
    %v1313 = vpack.c.b16 %v969, %v965
    %v1314 = vpack.c.b16 %v970, %v966
    %v1315 = vpack.c.b16 %v975, %v971
    %v1316 = vpack.c.b16 %v976, %v972
    %v1317 = vpack.c.b16 %v977, %v973
    %v1318 = vpack.c.b16 %v978, %v974
    %v1319 = vpack.c.b16 %v983, %v979
    %v1320 = vpack.c.b16 %v984, %v980
    %v1321 = vpack.c.b16 %v985, %v981
    %v1322 = vpack.c.b16 %v986, %v982
    %v1323 = vpack.c.b16 %v991, %v987
    %v1324 = vpack.c.b16 %v992, %v988
    %v1325 = vpack.c.b16 %v993, %v989
    %v1326 = vpack.c.b16 %v994, %v990
    %v1327 = vpack.c.b16 %v999, %v995
    %v1328 = vpack.c.b16 %v1000, %v996
    %v1329 = vpack.c.b16 %v1001, %v997
    %v1330 = vpack.c.b16 %v1002, %v998
    %v1331 = vpack.c.b16 %v1007, %v1003
    %v1332 = vpack.c.b16 %v1008, %v1004
    %v1333 = vpack.c.b16 %v1009, %v1005
    %v1334 = vpack.c.b16 %v1010, %v1006
    %v1335 = vpack.c.b16 %v1015, %v1011
    %v1336 = vpack.c.b16 %v1016, %v1012
    %v1337 = vpack.c.b16 %v1017, %v1013
    %v1338 = vpack.c.b16 %v1018, %v1014
    %v1339 = vpack.c.b16 %v1023, %v1019
    %v1340 = vpack.c.b16 %v1024, %v1020
    %v1341 = vpack.c.b16 %v1025, %v1021
    %v1342 = vpack.c.b16 %v1026, %v1022
    %v1343 = vpack.c.b16 %v1031, %v1027
    %v1344 = vpack.c.b16 %v1032, %v1028
    %v1345 = vpack.c.b16 %v1033, %v1029
    %v1346 = vpack.c.b16 %v1034, %v1030
    %v1347 = vpack.c.b16 %v1039, %v1035
    %v1348 = vpack.c.b16 %v1040, %v1036
    %v1349 = vpack.c.b16 %v1041, %v1037
    %v1350 = vpack.c.b16 %v1042, %v1038
    %v1351 = vpack.c.b16 %v1047, %v1043
    %v1352 = vpack.c.b16 %v1048, %v1044
    %v1353 = vpack.c.b16 %v1049, %v1045
    %v1354 = vpack.c.b16 %v1050, %v1046
    %v1355 = vpack.c.b16 %v1055, %v1051
    %v1356 = vpack.c.b16 %v1056, %v1052
    %v1357 = vpack.c.b16 %v1057, %v1053
    %v1358 = vpack.c.b16 %v1058, %v1054
    %v1359 = vpack.c.b16 %v1063, %v1059
    %v1360 = vpack.c.b16 %v1064, %v1060
    %v1361 = vpack.c.b16 %v1065, %v1061
    %v1362 = vpack.c.b16 %v1066, %v1062
    %v1363 = vpack.c.b16 %v1071, %v1067
    %v1364 = vpack.c.b16 %v1072, %v1068
    %v1365 = vpack.c.b16 %v1073, %v1069
    %v1366 = vpack.c.b16 %v1074, %v1070
    %v1367 = vpack.c.b16 %v1079, %v1075
    %v1368 = vpack.c.b16 %v1080, %v1076
    %v1369 = vpack.c.b16 %v1081, %v1077
    %v1370 = vpack.c.b16 %v1082, %v1078
    %v1371 = vpack.c.b16 %v1087, %v1083
    %v1372 = vpack.c.b16 %v1088, %v1084
    %v1373 = vpack.c.b16 %v1089, %v1085
    %v1374 = vpack.c.b16 %v1090, %v1086
    %v1375 = vpack.c.b16 %v1095, %v1091
    %v1376 = vpack.c.b16 %v1096, %v1092
    %v1377 = vpack.c.b16 %v1097, %v1093
    %v1378 = vpack.c.b16 %v1098, %v1094
    %v1379 = vpack.c.b16 %v1103, %v1099
    %v1380 = vpack.c.b16 %v1104, %v1100
    %v1381 = vpack.c.b16 %v1105, %v1101
    %v1382 = vpack.c.b16 %v1106, %v1102
    %v1383 = vpack.c.b16 %v1111, %v1107
    %v1384 = vpack.c.b16 %v1112, %v1108
    %v1385 = vpack.c.b16 %v1113, %v1109
    %v1386 = vpack.c.b16 %v1114, %v1110
    %v1387 = vpack.c.b16 %v1119, %v1115
    %v1388 = vpack.c.b16 %v1120, %v1116
    %v1389 = vpack.c.b16 %v1121, %v1117
    %v1390 = vpack.c.b16 %v1122, %v1118
    %v1391 = vpack.c.b16 %v1127, %v1123
    %v1392 = vpack.c.b16 %v1128, %v1124
    %v1393 = vpack.c.b16 %v1129, %v1125
    %v1394 = vpack.c.b16 %v1130, %v1126
    %v1395 = vpack.c.b16 %v1135, %v1131
    %v1396 = vpack.c.b16 %v1136, %v1132
    %v1397 = vpack.c.b16 %v1137, %v1133
    %v1398 = vpack.c.b16 %v1138, %v1134
    %v1399 = vpack.c.b16 %v1143, %v1139
    %v1400 = vpack.c.b16 %v1144, %v1140
    %v1401 = vpack.c.b16 %v1145, %v1141
    %v1402 = vpack.c.b16 %v1146, %v1142
    %1659 = vmatprep.subr.bf16.mxu0 %v1176
    %1660 = vmatpush1.bf16.msra.mxu0 %v1175
    %1661 = vmatprep.subr.bf16.mxu0 %v1172
    %1662 = vmatpush1.bf16.msra.mxu0 %v1171
    %1663 = vmatprep.subr.bf16.mxu0 %v1168
    %1664 = vmatpush1.bf16.msra.mxu0 %v1167
    %1665 = vmatprep.subr.bf16.mxu0 %v1164
    %1666 = vmatpush1.bf16.msra.mxu0 %v1163
    %1667 = vmatprep.subr.bf16.mxu0 %v1160
    %1668 = vmatpush1.bf16.msra.mxu0 %v1159
    %1669 = vmatprep.subr.bf16.mxu0 %v1156
    %1670 = vmatpush1.bf16.msra.mxu0 %v1155
    %1671 = vmatprep.subr.bf16.mxu0 %v1152
    %1672 = vmatpush1.bf16.msra.mxu0 %v1151
    %1673 = vmatprep.subr.bf16.mxu0 %v1148
    %1674 = vmatpush1.bf16.msra.mxu0 %v1147
    %1675 = vmatprep.subr.bf16.mxu0 %v1208
    %1676 = vmatpush2.bf16.msra.mxu0 %v1207
    %1677 = vmatprep.subr.bf16.mxu0 %v1204
    %1678 = vmatpush2.bf16.msra.mxu0 %v1203
    %1679 = vmatprep.subr.bf16.mxu0 %v1200
    %1680 = vmatpush2.bf16.msra.mxu0 %v1199
    %1681 = vmatprep.subr.bf16.mxu0 %v1196
    %1682 = vmatpush2.bf16.msra.mxu0 %v1195
    %1683 = vmatprep.subr.bf16.mxu0 %v1192
    %1684 = vmatpush2.bf16.msra.mxu0 %v1191
    %1685 = vmatprep.subr.bf16.mxu0 %v1188
    %1686 = vmatpush2.bf16.msra.mxu0 %v1187
    %1687 = vmatprep.subr.bf16.mxu0 %v1184
    %1688 = vmatpush2.bf16.msra.mxu0 %v1183
    %1689 = vmatprep.subr.bf16.mxu0 %v1180
    %1690 = vmatpush2.bf16.msra.mxu0 %v1179
    %1691 = vmatprep.mubr.bf16.mxu0 %v116
    %1692 = vmatmul.mubr.bf16.gmra.mxu0 %v115
    %v1693 = vpop.f32.mrf.mxu0
    %v1694 = vadd.f32 0.0, %v1693
    %v1695 = vpop.f32.mrf.mxu0
    %v1696 = vadd.f32 0.0, %v1695
    %v1697 = vpop.f32.mrf.mxu0
    %v1698 = vpop.f32.mrf.mxu0
    %1699 = vdwg.mxu0
    %1700 = vmatprep.subr.bf16.mxu0 %v1240
    %1701 = vmatpush1.bf16.msra.mxu0 %v1239
    %1702 = vmatprep.subr.bf16.mxu0 %v1236
    %1703 = vmatpush1.bf16.msra.mxu0 %v1235
    %1704 = vmatprep.subr.bf16.mxu0 %v1232
    %1705 = vmatpush1.bf16.msra.mxu0 %v1231
    %1706 = vmatprep.subr.bf16.mxu0 %v1228
    %1707 = vmatpush1.bf16.msra.mxu0 %v1227
    %1708 = vmatprep.subr.bf16.mxu0 %v1224
    %1709 = vmatpush1.bf16.msra.mxu0 %v1223
    %1710 = vmatprep.subr.bf16.mxu0 %v1220
    %1711 = vmatpush1.bf16.msra.mxu0 %v1219
    %1712 = vmatprep.subr.bf16.mxu0 %v1216
    %1713 = vmatpush1.bf16.msra.mxu0 %v1215
    %1714 = vmatprep.subr.bf16.mxu0 %v1212
    %1715 = vmatpush1.bf16.msra.mxu0 %v1211
    %1716 = vmatprep.subr.bf16.mxu0 %v1272
    %1717 = vmatpush2.bf16.msra.mxu0 %v1271
    %1718 = vmatprep.subr.bf16.mxu0 %v1268
    %1719 = vmatpush2.bf16.msra.mxu0 %v1267
    %1720 = vmatprep.subr.bf16.mxu0 %v1264
    %1721 = vmatpush2.bf16.msra.mxu0 %v1263
    %1722 = vmatprep.subr.bf16.mxu0 %v1260
    %1723 = vmatpush2.bf16.msra.mxu0 %v1259
    %1724 = vmatprep.subr.bf16.mxu0 %v1256
    %1725 = vmatpush2.bf16.msra.mxu0 %v1255
    %1726 = vmatprep.subr.bf16.mxu0 %v1252
    %1727 = vmatpush2.bf16.msra.mxu0 %v1251
    %1728 = vmatprep.subr.bf16.mxu0 %v1248
    %1729 = vmatpush2.bf16.msra.mxu0 %v1247
    %1730 = vmatprep.subr.bf16.mxu0 %v1244
    %1731 = vmatpush2.bf16.msra.mxu0 %v1243
    %1732 = vmatprep.mubr.bf16.mxu0 %v118
    %1733 = vmatmul.mubr.bf16.gmra.mxu0 %v117
    %v1734 = vpop.f32.mrf.mxu0
    %v1735 = vadd.f32 %v1694, %v1734
    %v1736 = vpop.f32.mrf.mxu0
    %v1737 = vadd.f32 %v1696, %v1736
    %v1738 = vpop.f32.mrf.mxu0
    %v1739 = vpop.f32.mrf.mxu0
    %1740 = vdwg.mxu0
    %1741 = vmatprep.subr.bf16.mxu0 %v1304
    %1742 = vmatpush1.bf16.msra.mxu0 %v1303
    %1743 = vmatprep.subr.bf16.mxu0 %v1300
    %1744 = vmatpush1.bf16.msra.mxu0 %v1299
    %1745 = vmatprep.subr.bf16.mxu0 %v1296
    %1746 = vmatpush1.bf16.msra.mxu0 %v1295
    %1747 = vmatprep.subr.bf16.mxu0 %v1292
    %1748 = vmatpush1.bf16.msra.mxu0 %v1291
    %1749 = vmatprep.subr.bf16.mxu0 %v1288
    %1750 = vmatpush1.bf16.msra.mxu0 %v1287
    %1751 = vmatprep.subr.bf16.mxu0 %v1284
    %1752 = vmatpush1.bf16.msra.mxu0 %v1283
    %1753 = vmatprep.subr.bf16.mxu0 %v1280
    %1754 = vmatpush1.bf16.msra.mxu0 %v1279
    %1755 = vmatprep.subr.bf16.mxu0 %v1276
    %1756 = vmatpush1.bf16.msra.mxu0 %v1275
    %1757 = vmatprep.subr.bf16.mxu0 %v1336
    %1758 = vmatpush2.bf16.msra.mxu0 %v1335
    %1759 = vmatprep.subr.bf16.mxu0 %v1332
    %1760 = vmatpush2.bf16.msra.mxu0 %v1331
    %1761 = vmatprep.subr.bf16.mxu0 %v1328
    %1762 = vmatpush2.bf16.msra.mxu0 %v1327
    %1763 = vmatprep.subr.bf16.mxu0 %v1324
    %1764 = vmatpush2.bf16.msra.mxu0 %v1323
    %1765 = vmatprep.subr.bf16.mxu0 %v1320
    %1766 = vmatpush2.bf16.msra.mxu0 %v1319
    %1767 = vmatprep.subr.bf16.mxu0 %v1316
    %1768 = vmatpush2.bf16.msra.mxu0 %v1315
    %1769 = vmatprep.subr.bf16.mxu0 %v1312
    %1770 = vmatpush2.bf16.msra.mxu0 %v1311
    %1771 = vmatprep.subr.bf16.mxu0 %v1308
    %1772 = vmatpush2.bf16.msra.mxu0 %v1307
    %1773 = vmatprep.mubr.bf16.mxu0 %v120
    %1774 = vmatmul.mubr.bf16.gmra.mxu0 %v119
    %v1775 = vpop.f32.mrf.mxu0
    %v1776 = vadd.f32 %v1735, %v1775
    %v1777 = vpop.f32.mrf.mxu0
    %v1778 = vadd.f32 %v1737, %v1777
    %v1779 = vpop.f32.mrf.mxu0
    %v1780 = vpop.f32.mrf.mxu0
    %1781 = vdwg.mxu0
    %1782 = vmatprep.subr.bf16.mxu0 %v1368
    %1783 = vmatpush1.bf16.msra.mxu0 %v1367
    %1784 = vmatprep.subr.bf16.mxu0 %v1364
    %1785 = vmatpush1.bf16.msra.mxu0 %v1363
    %1786 = vmatprep.subr.bf16.mxu0 %v1360
    %1787 = vmatpush1.bf16.msra.mxu0 %v1359
    %1788 = vmatprep.subr.bf16.mxu0 %v1356
    %1789 = vmatpush1.bf16.msra.mxu0 %v1355
    %1790 = vmatprep.subr.bf16.mxu0 %v1352
    %1791 = vmatpush1.bf16.msra.mxu0 %v1351
    %1792 = vmatprep.subr.bf16.mxu0 %v1348
    %1793 = vmatpush1.bf16.msra.mxu0 %v1347
    %1794 = vmatprep.subr.bf16.mxu0 %v1344
    %1795 = vmatpush1.bf16.msra.mxu0 %v1343
    %1796 = vmatprep.subr.bf16.mxu0 %v1340
    %1797 = vmatpush1.bf16.msra.mxu0 %v1339
    %1798 = vmatprep.subr.bf16.mxu0 %v1400
    %1799 = vmatpush2.bf16.msra.mxu0 %v1399
    %1800 = vmatprep.subr.bf16.mxu0 %v1396
    %1801 = vmatpush2.bf16.msra.mxu0 %v1395
    %1802 = vmatprep.subr.bf16.mxu0 %v1392
    %1803 = vmatpush2.bf16.msra.mxu0 %v1391
    %1804 = vmatprep.subr.bf16.mxu0 %v1388
    %1805 = vmatpush2.bf16.msra.mxu0 %v1387
    %1806 = vmatprep.subr.bf16.mxu0 %v1384
    %1807 = vmatpush2.bf16.msra.mxu0 %v1383
    %1808 = vmatprep.subr.bf16.mxu0 %v1380
    %1809 = vmatpush2.bf16.msra.mxu0 %v1379
    %1810 = vmatprep.subr.bf16.mxu0 %v1376
    %1811 = vmatpush2.bf16.msra.mxu0 %v1375
    %1812 = vmatprep.subr.bf16.mxu0 %v1372
    %1813 = vmatpush2.bf16.msra.mxu0 %v1371
    %1814 = vmatprep.mubr.bf16.mxu0 %v122
    %1815 = vmatmul.mubr.bf16.gmra.mxu0 %v121
    %v1816 = vpop.f32.mrf.mxu0
    %v1817 = vadd.f32 %v1776, %v1816
    %v1818 = vpop.f32.mrf.mxu0
    %v1819 = vadd.f32 %v1778, %v1818
    %v1820 = vpop.f32.mrf.mxu0
    %v1821 = vpop.f32.mrf.mxu0
    %1822 = vdwg.mxu0
    %1823 = vmatprep.subr.bf16.mxu0 %v1178
    %1824 = vmatpush1.bf16.msra.mxu0 %v1177
    %1825 = vmatprep.subr.bf16.mxu0 %v1174
    %1826 = vmatpush1.bf16.msra.mxu0 %v1173
    %1827 = vmatprep.subr.bf16.mxu0 %v1170
    %1828 = vmatpush1.bf16.msra.mxu0 %v1169
    %1829 = vmatprep.subr.bf16.mxu0 %v1166
    %1830 = vmatpush1.bf16.msra.mxu0 %v1165
    %1831 = vmatprep.subr.bf16.mxu0 %v1162
    %1832 = vmatpush1.bf16.msra.mxu0 %v1161
    %1833 = vmatprep.subr.bf16.mxu0 %v1158
    %1834 = vmatpush1.bf16.msra.mxu0 %v1157
    %1835 = vmatprep.subr.bf16.mxu0 %v1154
    %1836 = vmatpush1.bf16.msra.mxu0 %v1153
    %1837 = vmatprep.subr.bf16.mxu0 %v1150
    %1838 = vmatpush1.bf16.msra.mxu0 %v1149
    %1839 = vmatprep.subr.bf16.mxu0 %v1210
    %1840 = vmatpush2.bf16.msra.mxu0 %v1209
    %1841 = vmatprep.subr.bf16.mxu0 %v1206
    %1842 = vmatpush2.bf16.msra.mxu0 %v1205
    %1843 = vmatprep.subr.bf16.mxu0 %v1202
    %1844 = vmatpush2.bf16.msra.mxu0 %v1201
    %1845 = vmatprep.subr.bf16.mxu0 %v1198
    %1846 = vmatpush2.bf16.msra.mxu0 %v1197
    %1847 = vmatprep.subr.bf16.mxu0 %v1194
    %1848 = vmatpush2.bf16.msra.mxu0 %v1193
    %1849 = vmatprep.subr.bf16.mxu0 %v1190
    %1850 = vmatpush2.bf16.msra.mxu0 %v1189
    %1851 = vmatprep.subr.bf16.mxu0 %v1186
    %1852 = vmatpush2.bf16.msra.mxu0 %v1185
    %1853 = vmatprep.subr.bf16.mxu0 %v1182
    %1854 = vmatpush2.bf16.msra.mxu0 %v1181
    %1855 = vmatprep.mubr.bf16.mxu0 %v116
    %1856 = vmatmul.mubr.bf16.gmra.mxu0 %v115
    %v1857 = vpop.f32.mrf.mxu0
    %v1858 = vadd.f32 0.0, %v1857
    %v1859 = vpop.f32.mrf.mxu0
    %v1860 = vadd.f32 0.0, %v1859
    %v1861 = vpop.f32.mrf.mxu0
    %v1862 = vpop.f32.mrf.mxu0
    %1863 = vdwg.mxu0
    %1864 = vmatprep.subr.bf16.mxu0 %v1242
    %1865 = vmatpush1.bf16.msra.mxu0 %v1241
    %1866 = vmatprep.subr.bf16.mxu0 %v1238
    %1867 = vmatpush1.bf16.msra.mxu0 %v1237
    %1868 = vmatprep.subr.bf16.mxu0 %v1234
    %1869 = vmatpush1.bf16.msra.mxu0 %v1233
    %1870 = vmatprep.subr.bf16.mxu0 %v1230
    %1871 = vmatpush1.bf16.msra.mxu0 %v1229
    %1872 = vmatprep.subr.bf16.mxu0 %v1226
    %1873 = vmatpush1.bf16.msra.mxu0 %v1225
    %1874 = vmatprep.subr.bf16.mxu0 %v1222
    %1875 = vmatpush1.bf16.msra.mxu0 %v1221
    %1876 = vmatprep.subr.bf16.mxu0 %v1218
    %1877 = vmatpush1.bf16.msra.mxu0 %v1217
    %1878 = vmatprep.subr.bf16.mxu0 %v1214
    %1879 = vmatpush1.bf16.msra.mxu0 %v1213
    %1880 = vmatprep.subr.bf16.mxu0 %v1274
    %1881 = vmatpush2.bf16.msra.mxu0 %v1273
    %1882 = vmatprep.subr.bf16.mxu0 %v1270
    %1883 = vmatpush2.bf16.msra.mxu0 %v1269
    %1884 = vmatprep.subr.bf16.mxu0 %v1266
    %1885 = vmatpush2.bf16.msra.mxu0 %v1265
    %1886 = vmatprep.subr.bf16.mxu0 %v1262
    %1887 = vmatpush2.bf16.msra.mxu0 %v1261
    %1888 = vmatprep.subr.bf16.mxu0 %v1258
    %1889 = vmatpush2.bf16.msra.mxu0 %v1257
    %1890 = vmatprep.subr.bf16.mxu0 %v1254
    %1891 = vmatpush2.bf16.msra.mxu0 %v1253
    %1892 = vmatprep.subr.bf16.mxu0 %v1250
    %1893 = vmatpush2.bf16.msra.mxu0 %v1249
    %1894 = vmatprep.subr.bf16.mxu0 %v1246
    %1895 = vmatpush2.bf16.msra.mxu0 %v1245
    %1896 = vmatprep.mubr.bf16.mxu0 %v118
    %1897 = vmatmul.mubr.bf16.gmra.mxu0 %v117
    %v1898 = vpop.f32.mrf.mxu0
    %v1899 = vadd.f32 %v1858, %v1898
    %v1900 = vpop.f32.mrf.mxu0
    %v1901 = vadd.f32 %v1860, %v1900
    %v1902 = vpop.f32.mrf.mxu0
    %v1903 = vpop.f32.mrf.mxu0
    %1904 = vdwg.mxu0
    %1905 = vmatprep.subr.bf16.mxu0 %v1306
    %1906 = vmatpush1.bf16.msra.mxu0 %v1305
    %1907 = vmatprep.subr.bf16.mxu0 %v1302
    %1908 = vmatpush1.bf16.msra.mxu0 %v1301
    %1909 = vmatprep.subr.bf16.mxu0 %v1298
    %1910 = vmatpush1.bf16.msra.mxu0 %v1297
    %1911 = vmatprep.subr.bf16.mxu0 %v1294
    %1912 = vmatpush1.bf16.msra.mxu0 %v1293
    %1913 = vmatprep.subr.bf16.mxu0 %v1290
    %1914 = vmatpush1.bf16.msra.mxu0 %v1289
    %1915 = vmatprep.subr.bf16.mxu0 %v1286
    %1916 = vmatpush1.bf16.msra.mxu0 %v1285
    %1917 = vmatprep.subr.bf16.mxu0 %v1282
    %1918 = vmatpush1.bf16.msra.mxu0 %v1281
    %1919 = vmatprep.subr.bf16.mxu0 %v1278
    %1920 = vmatpush1.bf16.msra.mxu0 %v1277
    %1921 = vmatprep.subr.bf16.mxu0 %v1338
    %1922 = vmatpush2.bf16.msra.mxu0 %v1337
    %1923 = vmatprep.subr.bf16.mxu0 %v1334
    %1924 = vmatpush2.bf16.msra.mxu0 %v1333
    %1925 = vmatprep.subr.bf16.mxu0 %v1330
    %1926 = vmatpush2.bf16.msra.mxu0 %v1329
    %1927 = vmatprep.subr.bf16.mxu0 %v1326
    %1928 = vmatpush2.bf16.msra.mxu0 %v1325
    %1929 = vmatprep.subr.bf16.mxu0 %v1322
    %1930 = vmatpush2.bf16.msra.mxu0 %v1321
    %1931 = vmatprep.subr.bf16.mxu0 %v1318
    %1932 = vmatpush2.bf16.msra.mxu0 %v1317
    %1933 = vmatprep.subr.bf16.mxu0 %v1314
    %1934 = vmatpush2.bf16.msra.mxu0 %v1313
    %1935 = vmatprep.subr.bf16.mxu0 %v1310
    %1936 = vmatpush2.bf16.msra.mxu0 %v1309
    %1937 = vmatprep.mubr.bf16.mxu0 %v120
    %1938 = vmatmul.mubr.bf16.gmra.mxu0 %v119
    %v1939 = vpop.f32.mrf.mxu0
    %v1940 = vadd.f32 %v1899, %v1939
    %v1941 = vpop.f32.mrf.mxu0
    %v1942 = vadd.f32 %v1901, %v1941
    %v1943 = vpop.f32.mrf.mxu0
    %v1944 = vpop.f32.mrf.mxu0
    %1945 = vdwg.mxu0
    %1946 = vmatprep.subr.bf16.mxu0 %v1370
    %1947 = vmatpush1.bf16.msra.mxu0 %v1369
    %1948 = vmatprep.subr.bf16.mxu0 %v1366
    %1949 = vmatpush1.bf16.msra.mxu0 %v1365
    %1950 = vmatprep.subr.bf16.mxu0 %v1362
    %1951 = vmatpush1.bf16.msra.mxu0 %v1361
    %1952 = vmatprep.subr.bf16.mxu0 %v1358
    %1953 = vmatpush1.bf16.msra.mxu0 %v1357
    %1954 = vmatprep.subr.bf16.mxu0 %v1354
    %1955 = vmatpush1.bf16.msra.mxu0 %v1353
    %1956 = vmatprep.subr.bf16.mxu0 %v1350
    %1957 = vmatpush1.bf16.msra.mxu0 %v1349
    %1958 = vmatprep.subr.bf16.mxu0 %v1346
    %1959 = vmatpush1.bf16.msra.mxu0 %v1345
    %1960 = vmatprep.subr.bf16.mxu0 %v1342
    %1961 = vmatpush1.bf16.msra.mxu0 %v1341
    %1962 = vmatprep.subr.bf16.mxu0 %v1402
    %1963 = vmatpush2.bf16.msra.mxu0 %v1401
    %1964 = vmatprep.subr.bf16.mxu0 %v1398
    %1965 = vmatpush2.bf16.msra.mxu0 %v1397
    %1966 = vmatprep.subr.bf16.mxu0 %v1394
    %1967 = vmatpush2.bf16.msra.mxu0 %v1393
    %1968 = vmatprep.subr.bf16.mxu0 %v1390
    %1969 = vmatpush2.bf16.msra.mxu0 %v1389
    %1970 = vmatprep.subr.bf16.mxu0 %v1386
    %1971 = vmatpush2.bf16.msra.mxu0 %v1385
    %1972 = vmatprep.subr.bf16.mxu0 %v1382
    %1973 = vmatpush2.bf16.msra.mxu0 %v1381
    %1974 = vmatprep.subr.bf16.mxu0 %v1378
    %1975 = vmatpush2.bf16.msra.mxu0 %v1377
    %1976 = vmatprep.subr.bf16.mxu0 %v1374
    %1977 = vmatpush2.bf16.msra.mxu0 %v1373
    %1978 = vmatprep.mubr.bf16.mxu0 %v122
    %1979 = vmatmul.mubr.bf16.gmra.mxu0 %v121
    %v1980 = vpop.f32.mrf.mxu0
    %v1981 = vadd.f32 %v1940, %v1980
    %v1982 = vpop.f32.mrf.mxu0
    %v1983 = vadd.f32 %v1942, %v1982
    %v1984 = vpop.f32.mrf.mxu0
    %v1985 = vpop.f32.mrf.mxu0
    %1986 = vdwg.mxu0
    %v1987 = vadd.f32 %v103, %v1817
    %v1988 = vadd.f32 %v104, %v1819
    %v1989 = vadd.f32 %v105, %v1981
    %v1990 = vadd.f32 %v106, %v1983
    %1991 = vst [vmem:[#allocation2] sm:$0xff] %v1987
    %1992 = vst [vmem:[#allocation2 + $0x8] sm:$0xff] %v1988
    %1993 = vst [vmem:[#allocation2 + $0x10] sm:$0xff] %v1989
    %1994 = vst [vmem:[#allocation2 + $0x18] sm:$0xff] %v1990
    // Predicated region
    $region42: #{tpu_custom_call.1} parent=1 // pred_check
      %p1995 = pneg %p73
    $region43: #{tpu_custom_call.1} parent=1 // pred_check_branch
      %1997 = sbr.rel (%p1995) target = $region45
    $region44: #{tpu_custom_call.1} parent=1 // pred_region
      %v1998 = vld [vmem:[#allocation2] sm:$0xff]
      %v1999 = vld [vmem:[#allocation2 + $0x8] sm:$0xff]
      %v2000 = vld [vmem:[#allocation2 + $0x10] sm:$0xff]
      %v2001 = vld [vmem:[#allocation2 + $0x18] sm:$0xff]
      %v2002 = vmax.f32 %v1998, 0.0
      %v2003 = vmax.f32 %v1999, 0.0
      %v2004 = vmax.f32 %v2000, 0.0
      %v2005 = vmax.f32 %v2001, 0.0
      %v2006 = vpack.c.bf16 %v2002, %v2002
      %v2007 = vpack.c.bf16 %v2003, %v2003
      %v2008 = vpack.c.bf16 %v2004, %v2004
      %v2009 = vpack.c.bf16 %v2005, %v2005
      %v2014 = vunpack.c.l.b16 %v2006
      %v2015 = vunpack.c.l.b16 %v2007
      %v2016 = vunpack.c.l.b16 %v2008
      %v2017 = vunpack.c.l.b16 %v2009
      %v2018 = vpack.c.b16 %v2015, %v2014
      %v2019 = vpack.c.b16 %v2017, %v2016
      %2022 = vst [vmem:[#allocation3] sm:$0xff] %v2018
      %2023 = vst [vmem:[#allocation3 + $0x8] sm:$0xff] %v2019
      %v2024 = vld [vmem:[#allocation3] sm:$0xff]
      %v2025 = vld [vmem:[#allocation3 + $0x8] sm:$0xff]
      %v2026 = vld [vmem:[#allocation10] sm:$0xf]
      %v2027 = vld [vmem:[#allocation10 + $0x4] sm:$0xf]
      %v2028 = vld [vmem:[#allocation10 + $0x8] sm:$0xf]
      %v2029 = vld [vmem:[#allocation10 + $0xc] sm:$0xf]
      %v2030 = vld [vmem:[#allocation10 + $0x10] sm:$0xf]
      %v2031 = vld [vmem:[#allocation10 + $0x14] sm:$0xf]
      %v2032 = vld [vmem:[#allocation10 + $0x18] sm:$0xf]
      %v2033 = vld [vmem:[#allocation10 + $0x1c] sm:$0xf]
      %v2034 = vld [vmem:[#allocation10 + $0x20] sm:$0xf]
      %v2035 = vld [vmem:[#allocation10 + $0x24] sm:$0xf]
      %v2036 = vld [vmem:[#allocation10 + $0x28] sm:$0xf]
      %v2037 = vld [vmem:[#allocation10 + $0x2c] sm:$0xf]
      %v2038 = vld [vmem:[#allocation10 + $0x30] sm:$0xf]
      %v2039 = vld [vmem:[#allocation10 + $0x34] sm:$0xf]
      %v2040 = vld [vmem:[#allocation10 + $0x38] sm:$0xf]
      %v2041 = vld [vmem:[#allocation10 + $0x3c] sm:$0xf]
      %v2042 = vld [vmem:[#allocation10 + $0x40] sm:$0xf]
      %v2043 = vld [vmem:[#allocation10 + $0x44] sm:$0xf]
      %v2044 = vld [vmem:[#allocation10 + $0x48] sm:$0xf]
      %v2045 = vld [vmem:[#allocation10 + $0x4c] sm:$0xf]
      %v2046 = vld [vmem:[#allocation10 + $0x50] sm:$0xf]
      %v2047 = vld [vmem:[#allocation10 + $0x54] sm:$0xf]
      %v2048 = vld [vmem:[#allocation10 + $0x58] sm:$0xf]
      %v2049 = vld [vmem:[#allocation10 + $0x5c] sm:$0xf]
      %v2050 = vld [vmem:[#allocation10 + $0x60] sm:$0xf]
      %v2051 = vld [vmem:[#allocation10 + $0x64] sm:$0xf]
      %v2052 = vld [vmem:[#allocation10 + $0x68] sm:$0xf]
      %v2053 = vld [vmem:[#allocation10 + $0x6c] sm:$0xf]
      %v2054 = vld [vmem:[#allocation10 + $0x70] sm:$0xf]
      %v2055 = vld [vmem:[#allocation10 + $0x74] sm:$0xf]
      %v2056 = vld [vmem:[#allocation10 + $0x78] sm:$0xf]
      %v2057 = vld [vmem:[#allocation10 + $0x7c] sm:$0xf]
      %v2058 = vld [vmem:[#allocation10 + $0x80] sm:$0xf]
      %v2059 = vld [vmem:[#allocation10 + $0x84] sm:$0xf]
      %v2060 = vld [vmem:[#allocation10 + $0x88] sm:$0xf]
      %v2061 = vld [vmem:[#allocation10 + $0x8c] sm:$0xf]
      %v2062 = vld [vmem:[#allocation10 + $0x90] sm:$0xf]
      %v2063 = vld [vmem:[#allocation10 + $0x94] sm:$0xf]
      %v2064 = vld [vmem:[#allocation10 + $0x98] sm:$0xf]
      %v2065 = vld [vmem:[#allocation10 + $0x9c] sm:$0xf]
      %v2066 = vld [vmem:[#allocation10 + $0xa0] sm:$0xf]
      %v2067 = vld [vmem:[#allocation10 + $0xa4] sm:$0xf]
      %v2068 = vld [vmem:[#allocation10 + $0xa8] sm:$0xf]
      %v2069 = vld [vmem:[#allocation10 + $0xac] sm:$0xf]
      %v2070 = vld [vmem:[#allocation10 + $0xb0] sm:$0xf]
      %v2071 = vld [vmem:[#allocation10 + $0xb4] sm:$0xf]
      %v2072 = vld [vmem:[#allocation10 + $0xb8] sm:$0xf]
      %v2073 = vld [vmem:[#allocation10 + $0xbc] sm:$0xf]
      %v2074 = vld [vmem:[#allocation10 + $0xc0] sm:$0xf]
      %v2075 = vld [vmem:[#allocation10 + $0xc4] sm:$0xf]
      %v2076 = vld [vmem:[#allocation10 + $0xc8] sm:$0xf]
      %v2077 = vld [vmem:[#allocation10 + $0xcc] sm:$0xf]
      %v2078 = vld [vmem:[#allocation10 + $0xd0] sm:$0xf]
      %v2079 = vld [vmem:[#allocation10 + $0xd4] sm:$0xf]
      %v2080 = vld [vmem:[#allocation10 + $0xd8] sm:$0xf]
      %v2081 = vld [vmem:[#allocation10 + $0xdc] sm:$0xf]
      %v2082 = vld [vmem:[#allocation10 + $0xe0] sm:$0xf]
      %v2083 = vld [vmem:[#allocation10 + $0xe4] sm:$0xf]
      %v2084 = vld [vmem:[#allocation10 + $0xe8] sm:$0xf]
      %v2085 = vld [vmem:[#allocation10 + $0xec] sm:$0xf]
      %v2086 = vld [vmem:[#allocation10 + $0xf0] sm:$0xf]
      %v2087 = vld [vmem:[#allocation10 + $0xf4] sm:$0xf]
      %v2088 = vld [vmem:[#allocation10 + $0xf8] sm:$0xf]
      %v2089 = vld [vmem:[#allocation10 + $0xfc] sm:$0xf]
      %v2090 = vld [vmem:[%s4] sm:$0x1]
      %v2092 = vlaneseq
      %v2093 = vshrl.u32 %v2092, 7
      %v2094 = vsub.s32 0, %v2093
      %v2095 = vrot.slane %v2090, %v2094
      %v2099 = vunpack.c.l.b16 %v2024
      %v2100 = vunpack.c.h.b16 %v2024
      %v2101 = vunpack.c.l.b16 %v2025
      %v2102 = vunpack.c.h.b16 %v2025
      %v2103 = vpack.c.b16 %v2099, %v2099
      %v2104 = vpack.c.b16 %v2100, %v2100
      %v2105 = vpack.c.b16 %v2101, %v2101
      %v2106 = vpack.c.b16 %v2102, %v2102
      %v2175 = vunpack.c.l.b16 %v2026
      %v2176 = vunpack.c.l.b16 %v2027
      %v2177 = vunpack.c.l.b16 %v2028
      %v2178 = vunpack.c.l.b16 %v2029
      %v2179 = vunpack.c.l.b16 %v2030
      %v2180 = vunpack.c.l.b16 %v2031
      %v2181 = vunpack.c.l.b16 %v2032
      %v2182 = vunpack.c.l.b16 %v2033
      %v2183 = vunpack.c.l.b16 %v2034
      %v2184 = vunpack.c.l.b16 %v2035
      %v2185 = vunpack.c.l.b16 %v2036
      %v2186 = vunpack.c.l.b16 %v2037
      %v2187 = vunpack.c.l.b16 %v2038
      %v2188 = vunpack.c.l.b16 %v2039
      %v2189 = vunpack.c.l.b16 %v2040
      %v2190 = vunpack.c.l.b16 %v2041
      %v2191 = vunpack.c.l.b16 %v2042
      %v2192 = vunpack.c.l.b16 %v2043
      %v2193 = vunpack.c.l.b16 %v2044
      %v2194 = vunpack.c.l.b16 %v2045
      %v2195 = vunpack.c.l.b16 %v2046
      %v2196 = vunpack.c.l.b16 %v2047
      %v2197 = vunpack.c.l.b16 %v2048
      %v2198 = vunpack.c.l.b16 %v2049
      %v2199 = vunpack.c.l.b16 %v2050
      %v2200 = vunpack.c.l.b16 %v2051
      %v2201 = vunpack.c.l.b16 %v2052
      %v2202 = vunpack.c.l.b16 %v2053
      %v2203 = vunpack.c.l.b16 %v2054
      %v2204 = vunpack.c.l.b16 %v2055
      %v2205 = vunpack.c.l.b16 %v2056
      %v2206 = vunpack.c.l.b16 %v2057
      %v2207 = vunpack.c.l.b16 %v2058
      %v2208 = vunpack.c.l.b16 %v2059
      %v2209 = vunpack.c.l.b16 %v2060
      %v2210 = vunpack.c.l.b16 %v2061
      %v2211 = vunpack.c.l.b16 %v2062
      %v2212 = vunpack.c.l.b16 %v2063
      %v2213 = vunpack.c.l.b16 %v2064
      %v2214 = vunpack.c.l.b16 %v2065
      %v2215 = vunpack.c.l.b16 %v2066
      %v2216 = vunpack.c.l.b16 %v2067
      %v2217 = vunpack.c.l.b16 %v2068
      %v2218 = vunpack.c.l.b16 %v2069
      %v2219 = vunpack.c.l.b16 %v2070
      %v2220 = vunpack.c.l.b16 %v2071
      %v2221 = vunpack.c.l.b16 %v2072
      %v2222 = vunpack.c.l.b16 %v2073
      %v2223 = vunpack.c.l.b16 %v2074
      %v2224 = vunpack.c.l.b16 %v2075
      %v2225 = vunpack.c.l.b16 %v2076
      %v2226 = vunpack.c.l.b16 %v2077
      %v2227 = vunpack.c.l.b16 %v2078
      %v2228 = vunpack.c.l.b16 %v2079
      %v2229 = vunpack.c.l.b16 %v2080
      %v2230 = vunpack.c.l.b16 %v2081
      %v2231 = vunpack.c.l.b16 %v2082
      %v2232 = vunpack.c.l.b16 %v2083
      %v2233 = vunpack.c.l.b16 %v2084
      %v2234 = vunpack.c.l.b16 %v2085
      %v2235 = vunpack.c.l.b16 %v2086
      %v2236 = vunpack.c.l.b16 %v2087
      %v2237 = vunpack.c.l.b16 %v2088
      %v2238 = vunpack.c.l.b16 %v2089
      %v2239 = vpack.c.b16 %v2176, %v2175
      %v2240 = vpack.c.b16 %v2178, %v2177
      %v2241 = vpack.c.b16 %v2180, %v2179
      %v2242 = vpack.c.b16 %v2182, %v2181
      %v2243 = vpack.c.b16 %v2184, %v2183
      %v2244 = vpack.c.b16 %v2186, %v2185
      %v2245 = vpack.c.b16 %v2188, %v2187
      %v2246 = vpack.c.b16 %v2190, %v2189
      %v2247 = vpack.c.b16 %v2192, %v2191
      %v2248 = vpack.c.b16 %v2194, %v2193
      %v2249 = vpack.c.b16 %v2196, %v2195
      %v2250 = vpack.c.b16 %v2198, %v2197
      %v2251 = vpack.c.b16 %v2200, %v2199
      %v2252 = vpack.c.b16 %v2202, %v2201
      %v2253 = vpack.c.b16 %v2204, %v2203
      %v2254 = vpack.c.b16 %v2206, %v2205
      %v2255 = vpack.c.b16 %v2208, %v2207
      %v2256 = vpack.c.b16 %v2210, %v2209
      %v2257 = vpack.c.b16 %v2212, %v2211
      %v2258 = vpack.c.b16 %v2214, %v2213
      %v2259 = vpack.c.b16 %v2216, %v2215
      %v2260 = vpack.c.b16 %v2218, %v2217
      %v2261 = vpack.c.b16 %v2220, %v2219
      %v2262 = vpack.c.b16 %v2222, %v2221
      %v2263 = vpack.c.b16 %v2224, %v2223
      %v2264 = vpack.c.b16 %v2226, %v2225
      %v2265 = vpack.c.b16 %v2228, %v2227
      %v2266 = vpack.c.b16 %v2230, %v2229
      %v2267 = vpack.c.b16 %v2232, %v2231
      %v2268 = vpack.c.b16 %v2234, %v2233
      %v2269 = vpack.c.b16 %v2236, %v2235
      %v2270 = vpack.c.b16 %v2238, %v2237
      %2303 = vmatprep.subr.bf16.mxu0 0
      %2304 = vmatpush1.bf16.msra.mxu0 %v2246
      %2305 = vmatprep.subr.bf16.mxu0 0
      %2306 = vmatpush1.bf16.msra.mxu0 %v2245
      %2307 = vmatprep.subr.bf16.mxu0 0
      %2308 = vmatpush1.bf16.msra.mxu0 %v2244
      %2309 = vmatprep.subr.bf16.mxu0 0
      %2310 = vmatpush1.bf16.msra.mxu0 %v2243
      %2311 = vmatprep.subr.bf16.mxu0 0
      %2312 = vmatpush1.bf16.msra.mxu0 %v2242
      %2313 = vmatprep.subr.bf16.mxu0 0
      %2314 = vmatpush1.bf16.msra.mxu0 %v2241
      %2315 = vmatprep.subr.bf16.mxu0 0
      %2316 = vmatpush1.bf16.msra.mxu0 %v2240
      %2317 = vmatprep.subr.bf16.mxu0 0
      %2318 = vmatpush1.bf16.msra.mxu0 %v2239
      %2319 = vmatprep.subr.bf16.mxu0 0
      %2320 = vmatpush2.bf16.msra.mxu0 %v2254
      %2321 = vmatprep.subr.bf16.mxu0 0
      %2322 = vmatpush2.bf16.msra.mxu0 %v2253
      %2323 = vmatprep.subr.bf16.mxu0 0
      %2324 = vmatpush2.bf16.msra.mxu0 %v2252
      %2325 = vmatprep.subr.bf16.mxu0 0
      %2326 = vmatpush2.bf16.msra.mxu0 %v2251
      %2327 = vmatprep.subr.bf16.mxu0 0
      %2328 = vmatpush2.bf16.msra.mxu0 %v2250
      %2329 = vmatprep.subr.bf16.mxu0 0
      %2330 = vmatpush2.bf16.msra.mxu0 %v2249
      %2331 = vmatprep.subr.bf16.mxu0 0
      %2332 = vmatpush2.bf16.msra.mxu0 %v2248
      %2333 = vmatprep.subr.bf16.mxu0 0
      %2334 = vmatpush2.bf16.msra.mxu0 %v2247
      %2335 = vmatprep.mubr.bf16.mxu0 %v2104
      %2336 = vmatmul.mubr.bf16.gmra.mxu0 %v2103
      %v2337 = vpop.f32.mrf.mxu0
      %v2338 = vadd.f32 %v2095, %v2337
      %v2339 = vpop.f32.mrf.mxu0
      %v2340 = vpop.f32.mrf.mxu0
      %v2341 = vpop.f32.mrf.mxu0
      %2342 = vdwg.mxu0
      %2343 = vmatprep.subr.bf16.mxu0 0
      %2344 = vmatpush1.bf16.msra.mxu0 %v2262
      %2345 = vmatprep.subr.bf16.mxu0 0
      %2346 = vmatpush1.bf16.msra.mxu0 %v2261
      %2347 = vmatprep.subr.bf16.mxu0 0
      %2348 = vmatpush1.bf16.msra.mxu0 %v2260
      %2349 = vmatprep.subr.bf16.mxu0 0
      %2350 = vmatpush1.bf16.msra.mxu0 %v2259
      %2351 = vmatprep.subr.bf16.mxu0 0
      %2352 = vmatpush1.bf16.msra.mxu0 %v2258
      %2353 = vmatprep.subr.bf16.mxu0 0
      %2354 = vmatpush1.bf16.msra.mxu0 %v2257
      %2355 = vmatprep.subr.bf16.mxu0 0
      %2356 = vmatpush1.bf16.msra.mxu0 %v2256
      %2357 = vmatprep.subr.bf16.mxu0 0
      %2358 = vmatpush1.bf16.msra.mxu0 %v2255
      %2359 = vmatprep.subr.bf16.mxu0 0
      %2360 = vmatpush2.bf16.msra.mxu0 %v2270
      %2361 = vmatprep.subr.bf16.mxu0 0
      %2362 = vmatpush2.bf16.msra.mxu0 %v2269
      %2363 = vmatprep.subr.bf16.mxu0 0
      %2364 = vmatpush2.bf16.msra.mxu0 %v2268
      %2365 = vmatprep.subr.bf16.mxu0 0
      %2366 = vmatpush2.bf16.msra.mxu0 %v2267
      %2367 = vmatprep.subr.bf16.mxu0 0
      %2368 = vmatpush2.bf16.msra.mxu0 %v2266
      %2369 = vmatprep.subr.bf16.mxu0 0
      %2370 = vmatpush2.bf16.msra.mxu0 %v2265
      %2371 = vmatprep.subr.bf16.mxu0 0
      %2372 = vmatpush2.bf16.msra.mxu0 %v2264
      %2373 = vmatprep.subr.bf16.mxu0 0
      %2374 = vmatpush2.bf16.msra.mxu0 %v2263
      %2375 = vmatprep.mubr.bf16.mxu0 %v2106
      %2376 = vmatmul.mubr.bf16.gmra.mxu0 %v2105
      %v2377 = vpop.f32.mrf.mxu0
      %v2378 = vadd.f32 %v2338, %v2377
      %v2379 = vpop.f32.mrf.mxu0
      %v2380 = vpop.f32.mrf.mxu0
      %v2381 = vpop.f32.mrf.mxu0
      %2382 = vdwg.mxu0
      %2383 = vst [vmem:[#allocation12] sm:$0xff] %v2378
    $region45: #{tpu_custom_call.1} parent=1 // pred_fallthru
      _
    // Predicated region
    $region46: #{tpu_custom_call.1} parent=1 // pred_check
      _
    $region47: #{tpu_custom_call.1} parent=1 // pred_check_branch
      %2385 = sbr.rel (0) target = $region49
    $region48: #{tpu_custom_call.1} parent=1 // pred_region
      %s2387 = ssub.s32 128, 128
      %2388 = vsyncadd [#allocation6], %s2387
      %s2390 = sshll.u32 [#allocation12], 4
      %s2391 = int_to_ptr.vmem [resolvable:$true] %s2390
      %2393 = dma.vmem_to_hbm [thread:$0]  %s2391, 128, %s5, [#allocation6]
    $region49: #{tpu_custom_call.1} parent=1 // pred_fallthru
      _
    // Predicated region
    $region50: #{tpu_custom_call.1} parent=1 // pred_check
      _
    $region51: #{tpu_custom_call.1} parent=1 // pred_check_branch
      %2395 = sbr.rel (0) target = $region53
    $region52: #{tpu_custom_call.1} parent=1 // pred_region
      %2396 = dma.done [#allocation6], 128
    $region53: #{tpu_custom_call.1} parent=1 // pred_fallthru
      _
    %2397 = vsyncpa [#allocation5], 1
    %2398 = vsyncpa [#allocation8], 1
    %2399 = vsyncpa [#allocation11], 1
    %2400 = vsyncpa [#allocation6], 1

</llo_original>
